<compile_context>
chip_gen: v5e
topology: v5e:2x2
jax: 0.10.0
libtpu: 0.0.40
codegen_flags: <defaults>
</compile_context>

<pallas_src>
import functools

import jax
import jax.numpy as jnp
from jax.experimental import pallas as pl
from jax.experimental.pallas import tpu as pltpu

LN_EPS = 1e-5
HP = 128  # padded lane width for hidden / action slabs (one full vreg of lanes)


def _round_up(x, m):
    return ((x + m - 1) // m) * m


def _layer_norm(x, gamma, beta):
    # Plain LayerNorm over the last dim (pure-JAX reference), eps matches torch.
    mean = jnp.mean(x, axis=-1, keepdims=True)
    var = jnp.mean(jnp.square(x - mean), axis=-1, keepdims=True)
    return (x - mean) * jax.lax.rsqrt(var + LN_EPS) * gamma + beta


def _masked_layer_norm(x, gamma, beta, width):
    """LayerNorm over the first `width` lanes of a 128-lane-padded slab.

    Lanes >= width are explicitly excluded from the mean/variance, so correctness
    does not depend on the padding lanes of `x` being exactly zero.
    """
    inv = 1.0 / width
    lane = jax.lax.broadcasted_iota(jnp.int32, x.shape, dimension=x.ndim - 1)
    mask = lane < width
    mean = jnp.sum(jnp.where(mask, x, 0.0), axis=-1, keepdims=True) * inv
    d = jnp.where(mask, x - mean, 0.0)
    var = jnp.sum(d * d, axis=-1, keepdims=True) * inv
    return d * jax.lax.rsqrt(var + LN_EPS) * gamma + beta


def rnn_agent_kernel(x_ref, h0_ref, w1_ref, wi_ref, wh_ref, w2_ref, vb_ref,
                     q_ref, h_ref, gi_scr, hs_scr, *,
                     t_steps, batch, hidden_dim, n_actions):
    T, B, H, A = t_steps, batch, hidden_dim, n_actions
    f32 = jnp.float32

    # ---- resident vector parameters (each read exactly once, full-lane rows) ------
    b1 = vb_ref[0:1, :HP]
    g1 = vb_ref[1:2, :HP]
    be1 = vb_ref[2:3, :HP]
    b_g = vb_ref[3:4, :]                                   # (1, 3*HP): [b_ir+b_hr | b_iz+b_hz | b_in]
    b_hn = jnp.broadcast_to(vb_ref[4:5, :HP], (B, HP))     # hoisted broadcast (not re-done per step)
    b2 = vb_ref[5:6, :HP]
    g2 = vb_ref[6:7, :HP]
    be2 = vb_ref[7:8, :HP]

    # ---- phase 1: batched x-only projections over all T*B rows --------------------
    x = x_ref[...]                                          # (T*B, DP) lane-dense, zero-padded
    pre1 = jnp.dot(x, w1_ref[...], preferred_element_type=f32) + b1
    a = jnp.maximum(_masked_layer_norm(pre1, g1, be1, H), 0.0)   # exact zeros beyond H
    gi_scr[...] = jnp.dot(a, wi_ref[...], preferred_element_type=f32) + b_g   # (T*B, 3*HP)

    # ---- phase 2: sequential GRU recurrence (only h-dependent work stays serial) --
    wh = wh_ref[...]                                        # (HP, 3*HP), resident
    h = h0_ref[...].astype(f32)                             # (B, HP), zeros beyond H
    for t in range(T):                                      # static unroll: T small & known
        r0 = t * B                                          # static, sublane-aligned offsets
        gi = gi_scr[r0:r0 + B, :]                           # (B, 3*HP) vreg-aligned slabs
        gh = jnp.dot(h, wh, preferred_element_type=f32)     # ONE MXU dot per step
        r = jax.nn.sigmoid(gi[:, 0 * HP:1 * HP] + gh[:, 0 * HP:1 * HP])
        z = jax.nn.sigmoid(gi[:, 1 * HP:2 * HP] + gh[:, 1 * HP:2 * HP])
        n = jnp.tanh(gi[:, 2 * HP:3 * HP] + r * (gh[:, 2 * HP:3 * HP] + b_hn))
        h = n + z * (h - n)                                 # == (1 - z) * n + z * h_prev
        hs_scr[r0:r0 + B, :] = h                            # padding lanes stay exactly 0

    # TODO(synk): nn.Dropout is identity in eval mode; training-mode RNG masking not emitted.
    h_ref[...] = h.astype(h_ref.dtype)

    # ---- phase 3: batched fc2 + masked LayerNorm2, lane-dense (T*B, 128) store ----
    hs = hs_scr[...]
    pre2 = jnp.dot(hs, w2_ref[...], preferred_element_type=f32) + b2
    q_ref[...] = _masked_layer_norm(pre2, g2, be2, A).astype(q_ref.dtype)


def rnn_agent_rollout(x_seq, h0, packed, *, hidden_dim, n_actions):
    """Run T fused RNNAgent steps in a single pallas_call. Returns (q[T,B,A], h[B,H])."""
    w1p, wip, whp, w2p, vbp = packed
    T, B, Din = x_seq.shape
    DP = w1p.shape[0]

    x_flat = x_seq.reshape(T * B, Din)
    if DP != Din:
        x_flat = jnp.pad(x_flat, ((0, 0), (0, DP - Din)))
    h0p = h0 if h0.shape[-1] == HP else jnp.pad(h0, ((0, 0), (0, HP - h0.shape[-1])))

    kernel = functools.partial(rnn_agent_kernel, t_steps=T, batch=B,
                               hidden_dim=hidden_dim, n_actions=n_actions)
    vmem_spec = pl.BlockSpec(memory_space=pltpu.MemorySpace.VMEM)

    q_flat, h_last = pl.pallas_call(
        kernel,
        out_shape=(
            jax.ShapeDtypeStruct((T * B, HP), jnp.float32),
            jax.ShapeDtypeStruct((B, HP), jnp.float32),
        ),
        in_specs=[vmem_spec] * 7,
        out_specs=(vmem_spec, vmem_spec),
        scratch_shapes=[
            pltpu.VMEM((T * B, 3 * HP), jnp.float32),   # precomputed gate inputs gi
            pltpu.VMEM((T * B, HP), jnp.float32),       # per-step hidden states
        ],
    )(x_flat, h0p, w1p, wip, whp, w2p, vbp)

    q_seq = q_flat.reshape(T, B, HP)[:, :, :n_actions]
    return q_seq, h_last[:, :hidden_dim]


def rnn_agent_forward(x, h, packed, *, hidden_dim, n_actions):
    """Single GRU step, identical semantics to RNNAgent.forward (returns (q, h))."""
    q_seq, h_new = rnn_agent_rollout(x[None], h, packed,
                                     hidden_dim=hidden_dim, n_actions=n_actions)
    return q_seq[0], h_new


# ----------------------------- parameter handling -----------------------------

def init_params(key, input_shape, hidden_dim, n_actions):
    ks = jax.random.split(key, 4)

    def lin(k, fan_in, fan_out):
        bound = 1.0 / jnp.sqrt(fan_in)
        kw, kb = jax.random.split(k)
        w = jax.random.uniform(kw, (fan_in, fan_out), jnp.float32, -bound, bound)
        b = jax.random.uniform(kb, (1, fan_out), jnp.float32, -bound, bound)
        return w, b

    w1, b1 = lin(ks[0], input_shape, hidden_dim)
    wih, bih = lin(ks[1], hidden_dim, 3 * hidden_dim)   # GRU input weights  (in, 3H) [r|z|n]
    whh, bhh = lin(ks[2], hidden_dim, 3 * hidden_dim)   # GRU hidden weights (in, 3H) [r|z|n]
    w2, b2 = lin(ks[3], hidden_dim, n_actions)

    return dict(
        w1=w1, b1=b1,
        g1=jnp.ones((1, hidden_dim), jnp.float32),
        be1=jnp.zeros((1, hidden_dim), jnp.float32),
        wih=wih, bih=bih, whh=whh, bhh=bhh,
        w2=w2, b2=b2,
        g2=jnp.ones((1, n_actions), jnp.float32),
        be2=jnp.zeros((1, n_actions), jnp.float32),
    )


def pack_params(p, input_shape, hidden_dim, n_actions):
    """Zero-pad every parameter to full 128-lane slabs (lane-dense in-kernel access)."""
    Din, H, A = input_shape, hidden_dim, n_actions
    assert H <= HP and A <= HP
    DP = _round_up(Din, 128)                              # lane-dense x load

    w1p = jnp.zeros((DP, HP), jnp.float32).at[:Din, :H].set(p["w1"])

    # One 128-lane slab per GRU gate (r, z, n); hidden-side gates concatenated -> 1 dot/step.
    wip = jnp.zeros((HP, 3 * HP), jnp.float32)
    whp = jnp.zeros((HP, 3 * HP), jnp.float32)
    for g in range(3):
        wip = wip.at[:H, g * HP:g * HP + H].set(p["wih"][:, g * H:(g + 1) * H])
        whp = whp.at[:H, g * HP:g * HP + H].set(p["whh"][:, g * H:(g + 1) * H])

    w2p = jnp.zeros((HP, HP), jnp.float32).at[:H, :A].set(p["w2"])

    vbp = jnp.zeros((8, 3 * HP), jnp.float32)
    vbp = vbp.at[0, :H].set(p["b1"][0])
    vbp = vbp.at[1, :H].set(p["g1"][0])
    vbp = vbp.at[2, :H].set(p["be1"][0])
    # Pre-summed r/z gate biases folded into the batched input projection; b_in in n-slab.
    vbp = vbp.at[3, 0 * HP:0 * HP + H].set(p["bih"][0, 0:H] + p["bhh"][0, 0:H])
    vbp = vbp.at[3, 1 * HP:1 * HP + H].set(p["bih"][0, H:2 * H] + p["bhh"][0, H:2 * H])
    vbp = vbp.at[3, 2 * HP:2 * HP + H].set(p["bih"][0, 2 * H:3 * H])
    vbp = vbp.at[4, :H].set(p["bhh"][0, 2 * H:3 * H])    # b_hn (stays inside r * (...))
    vbp = vbp.at[5, :A].set(p["b2"][0])
    vbp = vbp.at[6, :A].set(p["g2"][0])
    vbp = vbp.at[7, :A].set(p["be2"][0])
    return (w1p, wip, whp, w2p, vbp)


# ----------------------------- pure-JAX reference -----------------------------

def _reference_rollout(x_seq, h0, p, hidden_dim):
    H = hidden_dim

    def step(h, x):
        pre1 = x @ p["w1"] + p["b1"]
        a = jnp.maximum(_layer_norm(pre1, p["g1"], p["be1"]), 0.0)
        gi = a @ p["wih"] + p["bih"]
        gh = h @ p["whh"] + p["bhh"]
        r = jax.nn.sigmoid(gi[:, :H] + gh[:, :H])
        z = jax.nn.sigmoid(gi[:, H:2 * H] + gh[:, H:2 * H])
        n = jnp.tanh(gi[:, 2 * H:] + r * gh[:, 2 * H:])
        h_new = (1.0 - z) * n + z * h
        q = _layer_norm(h_new @ p["w2"] + p["b2"], p["g2"], p["be2"])
        return h_new, (q, h_new)

    h_last, (q_seq, h_seq) = jax.lax.scan(step, h0, x_seq)
    return q_seq, h_seq, h_last


if __name__ == "__main__":
    # args: batch_size=2, n_agents=4, obs_dim=12 -> input_shape = 16, B = 8
    batch_size, n_agents, obs_dim = 2, 4, 12
    input_shape = obs_dim + n_agents
    hidden_dim = 32
    n_actions = 8
    T = 8
    B = batch_size * n_agents

    key = jax.random.PRNGKey(0)
    k_x, k_p = jax.random.split(key)

    x_seq = jax.random.normal(k_x, (T, B, input_shape), jnp.float32)
    h0 = jnp.zeros((B, hidden_dim), jnp.float32)            # init_hidden()-style zeros
    params = init_params(k_p, input_shape, hidden_dim, n_actions)
    packed = pack_params(params, input_shape, hidden_dim, n_actions)

    # fused multi-step rollout: one kernel launch for all T GRU steps
    q_seq, h_last = rnn_agent_rollout(x_seq, h0, packed,
                                      hidden_dim=hidden_dim, n_actions=n_actions)
    jax.block_until_ready((q_seq, h_last))
    assert q_seq.shape == (T, B, n_actions) and h_last.shape == (B, hidden_dim)

    # single-step forward, matching RNNAgent.forward(inputs, hidden_state)
    q1, h1 = rnn_agent_forward(x_seq[0], h0, packed,
                               hidden_dim=hidden_dim, n_actions=n_actions)
    jax.block_until_ready((q1, h1))
    assert q1.shape == (B, n_actions) and h1.shape == (B, hidden_dim)

    # correctness vs pure-JAX reference (loose tol: MXU f32 matmul precision)
    q_ref, h_seq_ref, h_last_ref = _reference_rollout(x_seq, h0, params, hidden_dim)
    assert bool(jnp.allclose(q_seq, q_ref, atol=5e-2, rtol=5e-2))
    assert bool(jnp.allclose(h_last, h_last_ref, atol=5e-2, rtol=5e-2))
    assert bool(jnp.allclose(q1, q_ref[0], atol=5e-2, rtol=5e-2))
    assert bool(jnp.allclose(h1, h_seq_ref[0], atol=5e-2, rtol=5e-2))

    print("KERNEL_OK")
</pallas_src>

<mosaic_0001>
module attributes {stable_mosaic.version = 11 : i64} {
  func.func @rnn_agent_kernel(%arg0: memref<64x128xf32, #tpu.memory_space<vmem>>, %arg1: memref<8x128xf32, #tpu.memory_space<vmem>>, %arg2: memref<128x128xf32, #tpu.memory_space<vmem>>, %arg3: memref<128x384xf32, #tpu.memory_space<vmem>>, %arg4: memref<128x384xf32, #tpu.memory_space<vmem>>, %arg5: memref<128x128xf32, #tpu.memory_space<vmem>>, %arg6: memref<8x384xf32, #tpu.memory_space<vmem>>, %arg7: memref<64x128xf32, #tpu.memory_space<vmem>>, %arg8: memref<8x128xf32, #tpu.memory_space<vmem>>, %arg9: memref<64x384xf32, #tpu.memory_space<vmem>>, %arg10: memref<64x128xf32, #tpu.memory_space<vmem>>) attributes {dimension_semantics = [], scalar_prefetch = 0 : i64, scratch_operands = 2 : i64, tpu.core_type = #tpu.core_type<tc>} {
    %c0 = arith.constant 0 : index
    %c0_0 = arith.constant 0 : index
    %0 = vector.load %arg6[%c0, %c0_0] : memref<8x384xf32, #tpu.memory_space<vmem>>, vector<1x128xf32>
    %c1 = arith.constant 1 : index
    %c0_1 = arith.constant 0 : index
    %1 = vector.load %arg6[%c1, %c0_1] : memref<8x384xf32, #tpu.memory_space<vmem>>, vector<1x128xf32>
    %c2 = arith.constant 2 : index
    %c0_2 = arith.constant 0 : index
    %2 = vector.load %arg6[%c2, %c0_2] : memref<8x384xf32, #tpu.memory_space<vmem>>, vector<1x128xf32>
    %c3 = arith.constant 3 : index
    %c0_3 = arith.constant 0 : index
    %3 = vector.load %arg6[%c3, %c0_3] : memref<8x384xf32, #tpu.memory_space<vmem>>, vector<1x384xf32>
    %c4 = arith.constant 4 : index
    %c0_4 = arith.constant 0 : index
    %4 = vector.load %arg6[%c4, %c0_4] : memref<8x384xf32, #tpu.memory_space<vmem>>, vector<1x128xf32>
    %5 = vector.shape_cast %4 : vector<1x128xf32> to vector<1x128xf32>
    %6 = vector.broadcast %5 : vector<1x128xf32> to vector<8x128xf32>
    %c5 = arith.constant 5 : index
    %c0_5 = arith.constant 0 : index
    %7 = vector.load %arg6[%c5, %c0_5] : memref<8x384xf32, #tpu.memory_space<vmem>>, vector<1x128xf32>
    %c6 = arith.constant 6 : index
    %c0_6 = arith.constant 0 : index
    %8 = vector.load %arg6[%c6, %c0_6] : memref<8x384xf32, #tpu.memory_space<vmem>>, vector<1x128xf32>
    %c7 = arith.constant 7 : index
    %c0_7 = arith.constant 0 : index
    %9 = vector.load %arg6[%c7, %c0_7] : memref<8x384xf32, #tpu.memory_space<vmem>>, vector<1x128xf32>
    %c0_8 = arith.constant 0 : index
    %c0_9 = arith.constant 0 : index
    %10 = vector.load %arg0[%c0_8, %c0_9] : memref<64x128xf32, #tpu.memory_space<vmem>>, vector<64x128xf32>
    %c0_10 = arith.constant 0 : index
    %c0_11 = arith.constant 0 : index
    %11 = vector.load %arg2[%c0_10, %c0_11] : memref<128x128xf32, #tpu.memory_space<vmem>>, vector<128x128xf32>
    %cst = arith.constant dense<0.000000e+00> : vector<64x128xf32>
    %12 = tpu.matmul %10, %11, %cst {dimension_numbers = #tpu.dot_dimension_numbers<[1], [0], [0], [1], [0, 0, 1, 1], [], []>} : vector<64x128xf32>, vector<128x128xf32>, vector<64x128xf32> -> vector<64x128xf32>
    %13 = vector.broadcast %0 : vector<1x128xf32> to vector<64x128xf32>
    %14 = arith.addf %12, %13 : vector<64x128xf32>
    %15 = tpu.iota {dimensions = array<i32: 1>} : vector<64x128xi32>
    %c32_i32 = arith.constant 32 : i32
    %16 = vector.broadcast %c32_i32 : i32 to vector<64x128xi32>
    %17 = arith.cmpi slt, %15, %16 : vector<64x128xi32>
    %cst_12 = arith.constant 0.000000e+00 : f32
    %18 = vector.broadcast %cst_12 : f32 to vector<64x128xf32>
    %19 = arith.select %17, %14, %18 : vector<64x128xi1>, vector<64x128xf32>
    %cst_13 = arith.constant dense<0.000000e+00> : vector<64xf32>
    %20 = vector.multi_reduction <add>, %19, %cst_13 [1] : vector<64x128xf32> to vector<64xf32>
    %21 = vector.shape_cast %20 : vector<64xf32> to vector<64x1xf32>
    %cst_14 = arith.constant 3.125000e-02 : f32
    %22 = vector.broadcast %cst_14 : f32 to vector<64x1xf32>
    %23 = arith.mulf %21, %22 : vector<64x1xf32>
    %24 = vector.broadcast %23 : vector<64x1xf32> to vector<64x128xf32>
    %25 = arith.subf %14, %24 : vector<64x128xf32>
    %cst_15 = arith.constant 0.000000e+00 : f32
    %26 = vector.broadcast %cst_15 : f32 to vector<64x128xf32>
    %27 = arith.select %17, %25, %26 : vector<64x128xi1>, vector<64x128xf32>
    %28 = arith.mulf %27, %27 : vector<64x128xf32>
    %cst_16 = arith.constant dense<0.000000e+00> : vector<64xf32>
    %29 = vector.multi_reduction <add>, %28, %cst_16 [1] : vector<64x128xf32> to vector<64xf32>
    %30 = vector.shape_cast %29 : vector<64xf32> to vector<64x1xf32>
    %cst_17 = arith.constant 3.125000e-02 : f32
    %31 = vector.broadcast %cst_17 : f32 to vector<64x1xf32>
    %32 = arith.mulf %30, %31 : vector<64x1xf32>
    %cst_18 = arith.constant 9.99999974E-6 : f32
    %33 = vector.broadcast %cst_18 : f32 to vector<64x1xf32>
    %34 = arith.addf %32, %33 : vector<64x1xf32>
    %35 = math.rsqrt %34 : vector<64x1xf32>
    %36 = vector.broadcast %35 : vector<64x1xf32> to vector<64x128xf32>
    %37 = arith.mulf %27, %36 : vector<64x128xf32>
    %38 = vector.broadcast %1 : vector<1x128xf32> to vector<64x128xf32>
    %39 = arith.mulf %37, %38 : vector<64x128xf32>
    %40 = vector.broadcast %2 : vector<1x128xf32> to vector<64x128xf32>
    %41 = arith.addf %39, %40 : vector<64x128xf32>
    %cst_19 = arith.constant 0.000000e+00 : f32
    %42 = vector.broadcast %cst_19 : f32 to vector<64x128xf32>
    %43 = arith.maximumf %41, %42 : vector<64x128xf32>
    %c0_20 = arith.constant 0 : index
    %c0_21 = arith.constant 0 : index
    %44 = vector.load %arg3[%c0_20, %c0_21] : memref<128x384xf32, #tpu.memory_space<vmem>>, vector<128x384xf32>
    %cst_22 = arith.constant dense<0.000000e+00> : vector<64x384xf32>
    %45 = tpu.matmul %43, %44, %cst_22 {dimension_numbers = #tpu.dot_dimension_numbers<[1], [0], [0], [1], [0, 0, 1, 1], [], []>} : vector<64x128xf32>, vector<128x384xf32>, vector<64x384xf32> -> vector<64x384xf32>
    %46 = vector.broadcast %3 : vector<1x384xf32> to vector<64x384xf32>
    %47 = arith.addf %45, %46 : vector<64x384xf32>
    %c0_23 = arith.constant 0 : index
    %c0_24 = arith.constant 0 : index
    %48 = vector.load %arg9[%c0_23, %c0_24] : memref<64x384xf32, #tpu.memory_space<vmem>>, vector<64x384xf32>
    tpu.vector_store %arg9[%c0_23, %c0_24], %47 {strides = array<i32>} : memref<64x384xf32, #tpu.memory_space<vmem>>, vector<64x384xf32>,
    %c0_25 = arith.constant 0 : index
    %c0_26 = arith.constant 0 : index
    %49 = vector.load %arg4[%c0_25, %c0_26] : memref<128x384xf32, #tpu.memory_space<vmem>>, vector<128x384xf32>
    %c0_27 = arith.constant 0 : index
    %c0_28 = arith.constant 0 : index
    %50 = vector.load %arg1[%c0_27, %c0_28] : memref<8x128xf32, #tpu.memory_space<vmem>>, vector<8x128xf32>
    %c0_29 = arith.constant 0 : index
    %c0_30 = arith.constant 0 : index
    %51 = vector.load %arg9[%c0_29, %c0_30] : memref<64x384xf32, #tpu.memory_space<vmem>>, vector<8x384xf32>
    %cst_31 = arith.constant dense<0.000000e+00> : vector<8x384xf32>
    %52 = tpu.matmul %50, %49, %cst_31 {dimension_numbers = #tpu.dot_dimension_numbers<[1], [0], [0], [1], [0, 0, 1, 1], [], []>} : vector<8x128xf32>, vector<128x384xf32>, vector<8x384xf32> -> vector<8x384xf32>
    %53 = vector.extract_strided_slice %51 {offsets = [0, 0], sizes = [8, 128], strides = [1, 1]} : vector<8x384xf32> to vector<8x128xf32>
    %54 = vector.extract_strided_slice %52 {offsets = [0, 0], sizes = [8, 128], strides = [1, 1]} : vector<8x384xf32> to vector<8x128xf32>
    %55 = arith.addf %53, %54 : vector<8x128xf32>
    %56 = arith.negf %55 : vector<8x128xf32>
    %57 = math.exp %56 : vector<8x128xf32>
    %cst_32 = arith.constant 1.000000e+00 : f32
    %58 = vector.broadcast %cst_32 : f32 to vector<8x128xf32>
    %59 = arith.addf %58, %57 : vector<8x128xf32>
    %60 = arith.divf %58, %59 : vector<8x128xf32>
    %61 = vector.extract_strided_slice %51 {offsets = [0, 128], sizes = [8, 128], strides = [1, 1]} : vector<8x384xf32> to vector<8x128xf32>
    %62 = vector.extract_strided_slice %52 {offsets = [0, 128], sizes = [8, 128], strides = [1, 1]} : vector<8x384xf32> to vector<8x128xf32>
    %63 = arith.addf %61, %62 : vector<8x128xf32>
    %64 = arith.negf %63 : vector<8x128xf32>
    %65 = math.exp %64 : vector<8x128xf32>
    %cst_33 = arith.constant 1.000000e+00 : f32
    %66 = vector.broadcast %cst_33 : f32 to vector<8x128xf32>
    %67 = arith.addf %66, %65 : vector<8x128xf32>
    %68 = arith.divf %66, %67 : vector<8x128xf32>
    %69 = vector.extract_strided_slice %51 {offsets = [0, 256], sizes = [8, 128], strides = [1, 1]} : vector<8x384xf32> to vector<8x128xf32>
    %70 = vector.extract_strided_slice %52 {offsets = [0, 256], sizes = [8, 128], strides = [1, 1]} : vector<8x384xf32> to vector<8x128xf32>
    %71 = arith.addf %70, %6 : vector<8x128xf32>
    %72 = arith.mulf %60, %71 : vector<8x128xf32>
    %73 = arith.addf %69, %72 : vector<8x128xf32>
    %74 = math.tanh %73 : vector<8x128xf32>
    %75 = arith.subf %50, %74 : vector<8x128xf32>
    %76 = arith.mulf %68, %75 : vector<8x128xf32>
    %77 = arith.addf %74, %76 : vector<8x128xf32>
    %c0_34 = arith.constant 0 : index
    %c0_35 = arith.constant 0 : index
    %78 = vector.load %arg10[%c0_34, %c0_35] : memref<64x128xf32, #tpu.memory_space<vmem>>, vector<8x128xf32>
    tpu.vector_store %arg10[%c0_34, %c0_35], %77 {strides = array<i32>} : memref<64x128xf32, #tpu.memory_space<vmem>>, vector<8x128xf32>,
    %c8 = arith.constant 8 : index
    %c0_36 = arith.constant 0 : index
    %79 = vector.load %arg9[%c8, %c0_36] : memref<64x384xf32, #tpu.memory_space<vmem>>, vector<8x384xf32>
    %cst_37 = arith.constant dense<0.000000e+00> : vector<8x384xf32>
    %80 = tpu.matmul %77, %49, %cst_37 {dimension_numbers = #tpu.dot_dimension_numbers<[1], [0], [0], [1], [0, 0, 1, 1], [], []>} : vector<8x128xf32>, vector<128x384xf32>, vector<8x384xf32> -> vector<8x384xf32>
    %81 = vector.extract_strided_slice %79 {offsets = [0, 0], sizes = [8, 128], strides = [1, 1]} : vector<8x384xf32> to vector<8x128xf32>
    %82 = vector.extract_strided_slice %80 {offsets = [0, 0], sizes = [8, 128], strides = [1, 1]} : vector<8x384xf32> to vector<8x128xf32>
    %83 = arith.addf %81, %82 : vector<8x128xf32>
    %84 = arith.negf %83 : vector<8x128xf32>
    %85 = math.exp %84 : vector<8x128xf32>
    %cst_38 = arith.constant 1.000000e+00 : f32
    %86 = vector.broadcast %cst_38 : f32 to vector<8x128xf32>
    %87 = arith.addf %86, %85 : vector<8x128xf32>
    %88 = arith.divf %86, %87 : vector<8x128xf32>
    %89 = vector.extract_strided_slice %79 {offsets = [0, 128], sizes = [8, 128], strides = [1, 1]} : vector<8x384xf32> to vector<8x128xf32>
    %90 = vector.extract_strided_slice %80 {offsets = [0, 128], sizes = [8, 128], strides = [1, 1]} : vector<8x384xf32> to vector<8x128xf32>
    %91 = arith.addf %89, %90 : vector<8x128xf32>
    %92 = arith.negf %91 : vector<8x128xf32>
    %93 = math.exp %92 : vector<8x128xf32>
    %cst_39 = arith.constant 1.000000e+00 : f32
    %94 = vector.broadcast %cst_39 : f32 to vector<8x128xf32>
    %95 = arith.addf %94, %93 : vector<8x128xf32>
    %96 = arith.divf %94, %95 : vector<8x128xf32>
    %97 = vector.extract_strided_slice %79 {offsets = [0, 256], sizes = [8, 128], strides = [1, 1]} : vector<8x384xf32> to vector<8x128xf32>
    %98 = vector.extract_strided_slice %80 {offsets = [0, 256], sizes = [8, 128], strides = [1, 1]} : vector<8x384xf32> to vector<8x128xf32>
    %99 = arith.addf %98, %6 : vector<8x128xf32>
    %100 = arith.mulf %88, %99 : vector<8x128xf32>
    %101 = arith.addf %97, %100 : vector<8x128xf32>
    %102 = math.tanh %101 : vector<8x128xf32>
    %103 = arith.subf %77, %102 : vector<8x128xf32>
    %104 = arith.mulf %96, %103 : vector<8x128xf32>
    %105 = arith.addf %102, %104 : vector<8x128xf32>
    %c8_40 = arith.constant 8 : index
    %c0_41 = arith.constant 0 : index
    %106 = vector.load %arg10[%c8_40, %c0_41] : memref<64x128xf32, #tpu.memory_space<vmem>>, vector<8x128xf32>
    tpu.vector_store %arg10[%c8_40, %c0_41], %105 {strides = array<i32>} : memref<64x128xf32, #tpu.memory_space<vmem>>, vector<8x128xf32>,
    %c16 = arith.constant 16 : index
    %c0_42 = arith.constant 0 : index
    %107 = vector.load %arg9[%c16, %c0_42] : memref<64x384xf32, #tpu.memory_space<vmem>>, vector<8x384xf32>
    %cst_43 = arith.constant dense<0.000000e+00> : vector<8x384xf32>
    %108 = tpu.matmul %105, %49, %cst_43 {dimension_numbers = #tpu.dot_dimension_numbers<[1], [0], [0], [1], [0, 0, 1, 1], [], []>} : vector<8x128xf32>, vector<128x384xf32>, vector<8x384xf32> -> vector<8x384xf32>
    %109 = vector.extract_strided_slice %107 {offsets = [0, 0], sizes = [8, 128], strides = [1, 1]} : vector<8x384xf32> to vector<8x128xf32>
    %110 = vector.extract_strided_slice %108 {offsets = [0, 0], sizes = [8, 128], strides = [1, 1]} : vector<8x384xf32> to vector<8x128xf32>
    %111 = arith.addf %109, %110 : vector<8x128xf32>
    %112 = arith.negf %111 : vector<8x128xf32>
    %113 = math.exp %112 : vector<8x128xf32>
    %cst_44 = arith.constant 1.000000e+00 : f32
    %114 = vector.broadcast %cst_44 : f32 to vector<8x128xf32>
    %115 = arith.addf %114, %113 : vector<8x128xf32>
    %116 = arith.divf %114, %115 : vector<8x128xf32>
    %117 = vector.extract_strided_slice %107 {offsets = [0, 128], sizes = [8, 128], strides = [1, 1]} : vector<8x384xf32> to vector<8x128xf32>
    %118 = vector.extract_strided_slice %108 {offsets = [0, 128], sizes = [8, 128], strides = [1, 1]} : vector<8x384xf32> to vector<8x128xf32>
    %119 = arith.addf %117, %118 : vector<8x128xf32>
    %120 = arith.negf %119 : vector<8x128xf32>
    %121 = math.exp %120 : vector<8x128xf32>
    %cst_45 = arith.constant 1.000000e+00 : f32
    %122 = vector.broadcast %cst_45 : f32 to vector<8x128xf32>
    %123 = arith.addf %122, %121 : vector<8x128xf32>
    %124 = arith.divf %122, %123 : vector<8x128xf32>
    %125 = vector.extract_strided_slice %107 {offsets = [0, 256], sizes = [8, 128], strides = [1, 1]} : vector<8x384xf32> to vector<8x128xf32>
    %126 = vector.extract_strided_slice %108 {offsets = [0, 256], sizes = [8, 128], strides = [1, 1]} : vector<8x384xf32> to vector<8x128xf32>
    %127 = arith.addf %126, %6 : vector<8x128xf32>
    %128 = arith.mulf %116, %127 : vector<8x128xf32>
    %129 = arith.addf %125, %128 : vector<8x128xf32>
    %130 = math.tanh %129 : vector<8x128xf32>
    %131 = arith.subf %105, %130 : vector<8x128xf32>
    %132 = arith.mulf %124, %131 : vector<8x128xf32>
    %133 = arith.addf %130, %132 : vector<8x128xf32>
    %c16_46 = arith.constant 16 : index
    %c0_47 = arith.constant 0 : index
    %134 = vector.load %arg10[%c16_46, %c0_47] : memref<64x128xf32, #tpu.memory_space<vmem>>, vector<8x128xf32>
    tpu.vector_store %arg10[%c16_46, %c0_47], %133 {strides = array<i32>} : memref<64x128xf32, #tpu.memory_space<vmem>>, vector<8x128xf32>,
    %c24 = arith.constant 24 : index
    %c0_48 = arith.constant 0 : index
    %135 = vector.load %arg9[%c24, %c0_48] : memref<64x384xf32, #tpu.memory_space<vmem>>, vector<8x384xf32>
    %cst_49 = arith.constant dense<0.000000e+00> : vector<8x384xf32>
    %136 = tpu.matmul %133, %49, %cst_49 {dimension_numbers = #tpu.dot_dimension_numbers<[1], [0], [0], [1], [0, 0, 1, 1], [], []>} : vector<8x128xf32>, vector<128x384xf32>, vector<8x384xf32> -> vector<8x384xf32>
    %137 = vector.extract_strided_slice %135 {offsets = [0, 0], sizes = [8, 128], strides = [1, 1]} : vector<8x384xf32> to vector<8x128xf32>
    %138 = vector.extract_strided_slice %136 {offsets = [0, 0], sizes = [8, 128], strides = [1, 1]} : vector<8x384xf32> to vector<8x128xf32>
    %139 = arith.addf %137, %138 : vector<8x128xf32>
    %140 = arith.negf %139 : vector<8x128xf32>
    %141 = math.exp %140 : vector<8x128xf32>
    %cst_50 = arith.constant 1.000000e+00 : f32
    %142 = vector.broadcast %cst_50 : f32 to vector<8x128xf32>
    %143 = arith.addf %142, %141 : vector<8x128xf32>
    %144 = arith.divf %142, %143 : vector<8x128xf32>
    %145 = vector.extract_strided_slice %135 {offsets = [0, 128], sizes = [8, 128], strides = [1, 1]} : vector<8x384xf32> to vector<8x128xf32>
    %146 = vector.extract_strided_slice %136 {offsets = [0, 128], sizes = [8, 128], strides = [1, 1]} : vector<8x384xf32> to vector<8x128xf32>
    %147 = arith.addf %145, %146 : vector<8x128xf32>
    %148 = arith.negf %147 : vector<8x128xf32>
    %149 = math.exp %148 : vector<8x128xf32>
    %cst_51 = arith.constant 1.000000e+00 : f32
    %150 = vector.broadcast %cst_51 : f32 to vector<8x128xf32>
    %151 = arith.addf %150, %149 : vector<8x128xf32>
    %152 = arith.divf %150, %151 : vector<8x128xf32>
    %153 = vector.extract_strided_slice %135 {offsets = [0, 256], sizes = [8, 128], strides = [1, 1]} : vector<8x384xf32> to vector<8x128xf32>
    %154 = vector.extract_strided_slice %136 {offsets = [0, 256], sizes = [8, 128], strides = [1, 1]} : vector<8x384xf32> to vector<8x128xf32>
    %155 = arith.addf %154, %6 : vector<8x128xf32>
    %156 = arith.mulf %144, %155 : vector<8x128xf32>
    %157 = arith.addf %153, %156 : vector<8x128xf32>
    %158 = math.tanh %157 : vector<8x128xf32>
    %159 = arith.subf %133, %158 : vector<8x128xf32>
    %160 = arith.mulf %152, %159 : vector<8x128xf32>
    %161 = arith.addf %158, %160 : vector<8x128xf32>
    %c24_52 = arith.constant 24 : index
    %c0_53 = arith.constant 0 : index
    %162 = vector.load %arg10[%c24_52, %c0_53] : memref<64x128xf32, #tpu.memory_space<vmem>>, vector<8x128xf32>
    tpu.vector_store %arg10[%c24_52, %c0_53], %161 {strides = array<i32>} : memref<64x128xf32, #tpu.memory_space<vmem>>, vector<8x128xf32>,
    %c32 = arith.constant 32 : index
    %c0_54 = arith.constant 0 : index
    %163 = vector.load %arg9[%c32, %c0_54] : memref<64x384xf32, #tpu.memory_space<vmem>>, vector<8x384xf32>
    %cst_55 = arith.constant dense<0.000000e+00> : vector<8x384xf32>
    %164 = tpu.matmul %161, %49, %cst_55 {dimension_numbers = #tpu.dot_dimension_numbers<[1], [0], [0], [1], [0, 0, 1, 1], [], []>} : vector<8x128xf32>, vector<128x384xf32>, vector<8x384xf32> -> vector<8x384xf32>
    %165 = vector.extract_strided_slice %163 {offsets = [0, 0], sizes = [8, 128], strides = [1, 1]} : vector<8x384xf32> to vector<8x128xf32>
    %166 = vector.extract_strided_slice %164 {offsets = [0, 0], sizes = [8, 128], strides = [1, 1]} : vector<8x384xf32> to vector<8x128xf32>
    %167 = arith.addf %165, %166 : vector<8x128xf32>
    %168 = arith.negf %167 : vector<8x128xf32>
    %169 = math.exp %168 : vector<8x128xf32>
    %cst_56 = arith.constant 1.000000e+00 : f32
    %170 = vector.broadcast %cst_56 : f32 to vector<8x128xf32>
    %171 = arith.addf %170, %169 : vector<8x128xf32>
    %172 = arith.divf %170, %171 : vector<8x128xf32>
    %173 = vector.extract_strided_slice %163 {offsets = [0, 128], sizes = [8, 128], strides = [1, 1]} : vector<8x384xf32> to vector<8x128xf32>
    %174 = vector.extract_strided_slice %164 {offsets = [0, 128], sizes = [8, 128], strides = [1, 1]} : vector<8x384xf32> to vector<8x128xf32>
    %175 = arith.addf %173, %174 : vector<8x128xf32>
    %176 = arith.negf %175 : vector<8x128xf32>
    %177 = math.exp %176 : vector<8x128xf32>
    %cst_57 = arith.constant 1.000000e+00 : f32
    %178 = vector.broadcast %cst_57 : f32 to vector<8x128xf32>
    %179 = arith.addf %178, %177 : vector<8x128xf32>
    %180 = arith.divf %178, %179 : vector<8x128xf32>
    %181 = vector.extract_strided_slice %163 {offsets = [0, 256], sizes = [8, 128], strides = [1, 1]} : vector<8x384xf32> to vector<8x128xf32>
    %182 = vector.extract_strided_slice %164 {offsets = [0, 256], sizes = [8, 128], strides = [1, 1]} : vector<8x384xf32> to vector<8x128xf32>
    %183 = arith.addf %182, %6 : vector<8x128xf32>
    %184 = arith.mulf %172, %183 : vector<8x128xf32>
    %185 = arith.addf %181, %184 : vector<8x128xf32>
    %186 = math.tanh %185 : vector<8x128xf32>
    %187 = arith.subf %161, %186 : vector<8x128xf32>
    %188 = arith.mulf %180, %187 : vector<8x128xf32>
    %189 = arith.addf %186, %188 : vector<8x128xf32>
    %c32_58 = arith.constant 32 : index
    %c0_59 = arith.constant 0 : index
    %190 = vector.load %arg10[%c32_58, %c0_59] : memref<64x128xf32, #tpu.memory_space<vmem>>, vector<8x128xf32>
    tpu.vector_store %arg10[%c32_58, %c0_59], %189 {strides = array<i32>} : memref<64x128xf32, #tpu.memory_space<vmem>>, vector<8x128xf32>,
    %c40 = arith.constant 40 : index
    %c0_60 = arith.constant 0 : index
    %191 = vector.load %arg9[%c40, %c0_60] : memref<64x384xf32, #tpu.memory_space<vmem>>, vector<8x384xf32>
    %cst_61 = arith.constant dense<0.000000e+00> : vector<8x384xf32>
    %192 = tpu.matmul %189, %49, %cst_61 {dimension_numbers = #tpu.dot_dimension_numbers<[1], [0], [0], [1], [0, 0, 1, 1], [], []>} : vector<8x128xf32>, vector<128x384xf32>, vector<8x384xf32> -> vector<8x384xf32>
    %193 = vector.extract_strided_slice %191 {offsets = [0, 0], sizes = [8, 128], strides = [1, 1]} : vector<8x384xf32> to vector<8x128xf32>
    %194 = vector.extract_strided_slice %192 {offsets = [0, 0], sizes = [8, 128], strides = [1, 1]} : vector<8x384xf32> to vector<8x128xf32>
    %195 = arith.addf %193, %194 : vector<8x128xf32>
    %196 = arith.negf %195 : vector<8x128xf32>
    %197 = math.exp %196 : vector<8x128xf32>
    %cst_62 = arith.constant 1.000000e+00 : f32
    %198 = vector.broadcast %cst_62 : f32 to vector<8x128xf32>
    %199 = arith.addf %198, %197 : vector<8x128xf32>
    %200 = arith.divf %198, %199 : vector<8x128xf32>
    %201 = vector.extract_strided_slice %191 {offsets = [0, 128], sizes = [8, 128], strides = [1, 1]} : vector<8x384xf32> to vector<8x128xf32>
    %202 = vector.extract_strided_slice %192 {offsets = [0, 128], sizes = [8, 128], strides = [1, 1]} : vector<8x384xf32> to vector<8x128xf32>
    %203 = arith.addf %201, %202 : vector<8x128xf32>
    %204 = arith.negf %203 : vector<8x128xf32>
    %205 = math.exp %204 : vector<8x128xf32>
    %cst_63 = arith.constant 1.000000e+00 : f32
    %206 = vector.broadcast %cst_63 : f32 to vector<8x128xf32>
    %207 = arith.addf %206, %205 : vector<8x128xf32>
    %208 = arith.divf %206, %207 : vector<8x128xf32>
    %209 = vector.extract_strided_slice %191 {offsets = [0, 256], sizes = [8, 128], strides = [1, 1]} : vector<8x384xf32> to vector<8x128xf32>
    %210 = vector.extract_strided_slice %192 {offsets = [0, 256], sizes = [8, 128], strides = [1, 1]} : vector<8x384xf32> to vector<8x128xf32>
    %211 = arith.addf %210, %6 : vector<8x128xf32>
    %212 = arith.mulf %200, %211 : vector<8x128xf32>
    %213 = arith.addf %209, %212 : vector<8x128xf32>
    %214 = math.tanh %213 : vector<8x128xf32>
    %215 = arith.subf %189, %214 : vector<8x128xf32>
    %216 = arith.mulf %208, %215 : vector<8x128xf32>
    %217 = arith.addf %214, %216 : vector<8x128xf32>
    %c40_64 = arith.constant 40 : index
    %c0_65 = arith.constant 0 : index
    %218 = vector.load %arg10[%c40_64, %c0_65] : memref<64x128xf32, #tpu.memory_space<vmem>>, vector<8x128xf32>
    tpu.vector_store %arg10[%c40_64, %c0_65], %217 {strides = array<i32>} : memref<64x128xf32, #tpu.memory_space<vmem>>, vector<8x128xf32>,
    %c48 = arith.constant 48 : index
    %c0_66 = arith.constant 0 : index
    %219 = vector.load %arg9[%c48, %c0_66] : memref<64x384xf32, #tpu.memory_space<vmem>>, vector<8x384xf32>
    %cst_67 = arith.constant dense<0.000000e+00> : vector<8x384xf32>
    %220 = tpu.matmul %217, %49, %cst_67 {dimension_numbers = #tpu.dot_dimension_numbers<[1], [0], [0], [1], [0, 0, 1, 1], [], []>} : vector<8x128xf32>, vector<128x384xf32>, vector<8x384xf32> -> vector<8x384xf32>
    %221 = vector.extract_strided_slice %219 {offsets = [0, 0], sizes = [8, 128], strides = [1, 1]} : vector<8x384xf32> to vector<8x128xf32>
    %222 = vector.extract_strided_slice %220 {offsets = [0, 0], sizes = [8, 128], strides = [1, 1]} : vector<8x384xf32> to vector<8x128xf32>
    %223 = arith.addf %221, %222 : vector<8x128xf32>
    %224 = arith.negf %223 : vector<8x128xf32>
    %225 = math.exp %224 : vector<8x128xf32>
    %cst_68 = arith.constant 1.000000e+00 : f32
    %226 = vector.broadcast %cst_68 : f32 to vector<8x128xf32>
    %227 = arith.addf %226, %225 : vector<8x128xf32>
    %228 = arith.divf %226, %227 : vector<8x128xf32>
    %229 = vector.extract_strided_slice %219 {offsets = [0, 128], sizes = [8, 128], strides = [1, 1]} : vector<8x384xf32> to vector<8x128xf32>
    %230 = vector.extract_strided_slice %220 {offsets = [0, 128], sizes = [8, 128], strides = [1, 1]} : vector<8x384xf32> to vector<8x128xf32>
    %231 = arith.addf %229, %230 : vector<8x128xf32>
    %232 = arith.negf %231 : vector<8x128xf32>
    %233 = math.exp %232 : vector<8x128xf32>
    %cst_69 = arith.constant 1.000000e+00 : f32
    %234 = vector.broadcast %cst_69 : f32 to vector<8x128xf32>
    %235 = arith.addf %234, %233 : vector<8x128xf32>
    %236 = arith.divf %234, %235 : vector<8x128xf32>
    %237 = vector.extract_strided_slice %219 {offsets = [0, 256], sizes = [8, 128], strides = [1, 1]} : vector<8x384xf32> to vector<8x128xf32>
    %238 = vector.extract_strided_slice %220 {offsets = [0, 256], sizes = [8, 128], strides = [1, 1]} : vector<8x384xf32> to vector<8x128xf32>
    %239 = arith.addf %238, %6 : vector<8x128xf32>
    %240 = arith.mulf %228, %239 : vector<8x128xf32>
    %241 = arith.addf %237, %240 : vector<8x128xf32>
    %242 = math.tanh %241 : vector<8x128xf32>
    %243 = arith.subf %217, %242 : vector<8x128xf32>
    %244 = arith.mulf %236, %243 : vector<8x128xf32>
    %245 = arith.addf %242, %244 : vector<8x128xf32>
    %c48_70 = arith.constant 48 : index
    %c0_71 = arith.constant 0 : index
    %246 = vector.load %arg10[%c48_70, %c0_71] : memref<64x128xf32, #tpu.memory_space<vmem>>, vector<8x128xf32>
    tpu.vector_store %arg10[%c48_70, %c0_71], %245 {strides = array<i32>} : memref<64x128xf32, #tpu.memory_space<vmem>>, vector<8x128xf32>,
    %c56 = arith.constant 56 : index
    %c0_72 = arith.constant 0 : index
    %247 = vector.load %arg9[%c56, %c0_72] : memref<64x384xf32, #tpu.memory_space<vmem>>, vector<8x384xf32>
    %cst_73 = arith.constant dense<0.000000e+00> : vector<8x384xf32>
    %248 = tpu.matmul %245, %49, %cst_73 {dimension_numbers = #tpu.dot_dimension_numbers<[1], [0], [0], [1], [0, 0, 1, 1], [], []>} : vector<8x128xf32>, vector<128x384xf32>, vector<8x384xf32> -> vector<8x384xf32>
    %249 = vector.extract_strided_slice %247 {offsets = [0, 0], sizes = [8, 128], strides = [1, 1]} : vector<8x384xf32> to vector<8x128xf32>
    %250 = vector.extract_strided_slice %248 {offsets = [0, 0], sizes = [8, 128], strides = [1, 1]} : vector<8x384xf32> to vector<8x128xf32>
    %251 = arith.addf %249, %250 : vector<8x128xf32>
    %252 = arith.negf %251 : vector<8x128xf32>
    %253 = math.exp %252 : vector<8x128xf32>
    %cst_74 = arith.constant 1.000000e+00 : f32
    %254 = vector.broadcast %cst_74 : f32 to vector<8x128xf32>
    %255 = arith.addf %254, %253 : vector<8x128xf32>
    %256 = arith.divf %254, %255 : vector<8x128xf32>
    %257 = vector.extract_strided_slice %247 {offsets = [0, 128], sizes = [8, 128], strides = [1, 1]} : vector<8x384xf32> to vector<8x128xf32>
    %258 = vector.extract_strided_slice %248 {offsets = [0, 128], sizes = [8, 128], strides = [1, 1]} : vector<8x384xf32> to vector<8x128xf32>
    %259 = arith.addf %257, %258 : vector<8x128xf32>
    %260 = arith.negf %259 : vector<8x128xf32>
    %261 = math.exp %260 : vector<8x128xf32>
    %cst_75 = arith.constant 1.000000e+00 : f32
    %262 = vector.broadcast %cst_75 : f32 to vector<8x128xf32>
    %263 = arith.addf %262, %261 : vector<8x128xf32>
    %264 = arith.divf %262, %263 : vector<8x128xf32>
    %265 = vector.extract_strided_slice %247 {offsets = [0, 256], sizes = [8, 128], strides = [1, 1]} : vector<8x384xf32> to vector<8x128xf32>
    %266 = vector.extract_strided_slice %248 {offsets = [0, 256], sizes = [8, 128], strides = [1, 1]} : vector<8x384xf32> to vector<8x128xf32>
    %267 = arith.addf %266, %6 : vector<8x128xf32>
    %268 = arith.mulf %256, %267 : vector<8x128xf32>
    %269 = arith.addf %265, %268 : vector<8x128xf32>
    %270 = math.tanh %269 : vector<8x128xf32>
    %271 = arith.subf %245, %270 : vector<8x128xf32>
    %272 = arith.mulf %264, %271 : vector<8x128xf32>
    %273 = arith.addf %270, %272 : vector<8x128xf32>
    %c56_76 = arith.constant 56 : index
    %c0_77 = arith.constant 0 : index
    %274 = vector.load %arg10[%c56_76, %c0_77] : memref<64x128xf32, #tpu.memory_space<vmem>>, vector<8x128xf32>
    tpu.vector_store %arg10[%c56_76, %c0_77], %273 {strides = array<i32>} : memref<64x128xf32, #tpu.memory_space<vmem>>, vector<8x128xf32>,
    %c0_78 = arith.constant 0 : index
    %c0_79 = arith.constant 0 : index
    %275 = vector.load %arg8[%c0_78, %c0_79] : memref<8x128xf32, #tpu.memory_space<vmem>>, vector<8x128xf32>
    tpu.vector_store %arg8[%c0_78, %c0_79], %273 {strides = array<i32>} : memref<8x128xf32, #tpu.memory_space<vmem>>, vector<8x128xf32>,
    %c0_80 = arith.constant 0 : index
    %c0_81 = arith.constant 0 : index
    %276 = vector.load %arg10[%c0_80, %c0_81] : memref<64x128xf32, #tpu.memory_space<vmem>>, vector<64x128xf32>
    %c0_82 = arith.constant 0 : index
    %c0_83 = arith.constant 0 : index
    %277 = vector.load %arg5[%c0_82, %c0_83] : memref<128x128xf32, #tpu.memory_space<vmem>>, vector<128x128xf32>
    %cst_84 = arith.constant dense<0.000000e+00> : vector<64x128xf32>
    %278 = tpu.matmul %276, %277, %cst_84 {dimension_numbers = #tpu.dot_dimension_numbers<[1], [0], [0], [1], [0, 0, 1, 1], [], []>} : vector<64x128xf32>, vector<128x128xf32>, vector<64x128xf32> -> vector<64x128xf32>
    %279 = vector.broadcast %7 : vector<1x128xf32> to vector<64x128xf32>
    %280 = arith.addf %278, %279 : vector<64x128xf32>
    %281 = tpu.iota {dimensions = array<i32: 1>} : vector<64x128xi32>
    %c8_i32 = arith.constant 8 : i32
    %282 = vector.broadcast %c8_i32 : i32 to vector<64x128xi32>
    %283 = arith.cmpi slt, %281, %282 : vector<64x128xi32>
    %cst_85 = arith.constant 0.000000e+00 : f32
    %284 = vector.broadcast %cst_85 : f32 to vector<64x128xf32>
    %285 = arith.select %283, %280, %284 : vector<64x128xi1>, vector<64x128xf32>
    %cst_86 = arith.constant dense<0.000000e+00> : vector<64xf32>
    %286 = vector.multi_reduction <add>, %285, %cst_86 [1] : vector<64x128xf32> to vector<64xf32>
    %287 = vector.shape_cast %286 : vector<64xf32> to vector<64x1xf32>
    %cst_87 = arith.constant 1.250000e-01 : f32
    %288 = vector.broadcast %cst_87 : f32 to vector<64x1xf32>
    %289 = arith.mulf %287, %288 : vector<64x1xf32>
    %290 = vector.broadcast %289 : vector<64x1xf32> to vector<64x128xf32>
    %291 = arith.subf %280, %290 : vector<64x128xf32>
    %cst_88 = arith.constant 0.000000e+00 : f32
    %292 = vector.broadcast %cst_88 : f32 to vector<64x128xf32>
    %293 = arith.select %283, %291, %292 : vector<64x128xi1>, vector<64x128xf32>
    %294 = arith.mulf %293, %293 : vector<64x128xf32>
    %cst_89 = arith.constant dense<0.000000e+00> : vector<64xf32>
    %295 = vector.multi_reduction <add>, %294, %cst_89 [1] : vector<64x128xf32> to vector<64xf32>
    %296 = vector.shape_cast %295 : vector<64xf32> to vector<64x1xf32>
    %cst_90 = arith.constant 1.250000e-01 : f32
    %297 = vector.broadcast %cst_90 : f32 to vector<64x1xf32>
    %298 = arith.mulf %296, %297 : vector<64x1xf32>
    %cst_91 = arith.constant 9.99999974E-6 : f32
    %299 = vector.broadcast %cst_91 : f32 to vector<64x1xf32>
    %300 = arith.addf %298, %299 : vector<64x1xf32>
    %301 = math.rsqrt %300 : vector<64x1xf32>
    %302 = vector.broadcast %301 : vector<64x1xf32> to vector<64x128xf32>
    %303 = arith.mulf %293, %302 : vector<64x128xf32>
    %304 = vector.broadcast %8 : vector<1x128xf32> to vector<64x128xf32>
    %305 = arith.mulf %303, %304 : vector<64x128xf32>
    %306 = vector.broadcast %9 : vector<1x128xf32> to vector<64x128xf32>
    %307 = arith.addf %305, %306 : vector<64x128xf32>
    %c0_92 = arith.constant 0 : index
    %c0_93 = arith.constant 0 : index
    %308 = vector.load %arg7[%c0_92, %c0_93] : memref<64x128xf32, #tpu.memory_space<vmem>>, vector<64x128xf32>
    tpu.vector_store %arg7[%c0_92, %c0_93], %307 {strides = array<i32>} : memref<64x128xf32, #tpu.memory_space<vmem>>, vector<64x128xf32>,
    return
  }
}

</mosaic_0001>

<llo_original>
// kernel: tpu_custom_call.1
$region0: #{tpu_custom_call.1}
  #allocation0 [shape = 'u32[]', space=smem, size = 0x4, offset = 0x4, fixed_abs, tag = 'smem constant byte address 0x4 - core index']
  #allocation1 [shape = 'u32[72,128]{1,0:T(1,128)}', space=vmem, size = 0x9000, scoped, tag = 'internal scratch']
  #allocation2 [shape = 'f32[64,384]{1,0:T(8,128)}', space=vmem, size = 0x18000, scoped, tag = 'scratch operand']
  #allocation3 [shape = 'f32[64,128]{1,0:T(8,128)}', space=vmem, size = 0x8000, scoped, tag = 'scratch operand']
  %s0 = inlined_call_operand.hbm [shape: f32[64,128], index: 0, kind: input, shape index: {}]
  %s1 = inlined_call_operand.hbm [shape: f32[8,128], index: 1, kind: input, shape index: {}]
  %s2 = inlined_call_operand.hbm [shape: f32[128,128], index: 2, kind: input, shape index: {}]
  %s3 = inlined_call_operand.hbm [shape: f32[128,384], index: 3, kind: input, shape index: {}]
  %s4 = inlined_call_operand.hbm [shape: f32[128,384], index: 4, kind: input, shape index: {}]
  %s5 = inlined_call_operand.hbm [shape: f32[128,128], index: 5, kind: input, shape index: {}]
  %s6 = inlined_call_operand.hbm [shape: f32[8,384], index: 6, kind: input, shape index: {}]
  %s7 = inlined_call_operand.hbm [shape: f32[64,128], index: 7, kind: output, shape index: {0}]
  %s8 = inlined_call_operand.hbm [shape: f32[8,128], index: 8, kind: output, shape index: {1}]
  %9 = xla_tuple %s7, %s8
  %s10 = sld [smem:[#allocation0]]
  $region74: #{tpu_custom_call.1} parent=0
    _
  %s12 = ssub.s32 1, %s10
  %s13 = scalar_select 0, %s12, %s10
  $region1: #{tpu_custom_call.1} parent=0
    #allocation4 [shape = 'u8[32768]{0}', space=vmem, size = 0x8000, scoped, tag = 'input window, operand 0, single buffered']
    #allocation5 [shape = 's32[1]{0}', space=sflag, size = 0x4, scoped, tag = 'scoped memory for tpu_custom_call.1']
    #allocation6 [shape = 's32[1]{0}', space=sflag, size = 0x4, scoped, tag = 'scoped memory for tpu_custom_call.1']
    #allocation7 [shape = 'u8[4096]{0}', space=vmem, size = 0x1000, scoped, tag = 'input window, operand 1, single buffered']
    #allocation8 [shape = 's32[1]{0}', space=sflag, size = 0x4, scoped, tag = 'scoped memory for tpu_custom_call.1']
    #allocation9 [shape = 'u8[65536]{0}', space=vmem, size = 0x10000, scoped, tag = 'input window, operand 2, single buffered']
    #allocation10 [shape = 'u8[196608]{0}', space=vmem, size = 0x30000, scoped, tag = 'input window, operand 3, single buffered']
    #allocation11 [shape = 's32[1]{0}', space=sflag, size = 0x4, scoped, tag = 'scoped memory for tpu_custom_call.1']
    #allocation12 [shape = 'u8[196608]{0}', space=vmem, size = 0x30000, scoped, tag = 'input window, operand 4, single buffered']
    #allocation13 [shape = 'u8[65536]{0}', space=vmem, size = 0x10000, scoped, tag = 'input window, operand 5, single buffered']
    #allocation14 [shape = 's32[1]{0}', space=sflag, size = 0x4, scoped, tag = 'scoped memory for tpu_custom_call.1']
    #allocation15 [shape = 'u8[12288]{0}', space=vmem, size = 0x3000, scoped, tag = 'input window, operand 6, single buffered']
    #allocation16 [shape = 'u8[32768]{0}', space=vmem, size = 0x8000, scoped, tag = 'output window, operand 0, single buffered']
    #allocation17 [shape = 'u8[4096]{0}', space=vmem, size = 0x1000, scoped, tag = 'output window, operand 1, single buffered']
    #allocation18 [shape = 's32[1]{0}', space=sflag, size = 0x4, scoped, tag = 'scoped memory for tpu_custom_call.1']
    %14 = vsyncpa [#allocation5], 0
    %15 = vsyncpa [#allocation8], 0
    %16 = vsyncpa [#allocation11], 0
    %17 = vsyncpa [#allocation14], 0
    %18 = vsyncpa [#allocation6], 0
    %19 = vsyncpa [#allocation18], 0
    // Predicated region
    $region2: #{tpu_custom_call.1} parent=1 // pred_check
      _
    $region3: #{tpu_custom_call.1} parent=1 // pred_check_branch
      %21 = sbr.rel (0) target = $region5
    $region4: #{tpu_custom_call.1} parent=1 // pred_region
      %23 = vsyncadd [#allocation5], 0
      %s24 = sshll.u32 %s0, 4
      %s25 = int_to_ptr.hbm [resolvable:$true] %s24
      %s26 = sshll.u32 [#allocation4], 4
      %s27 = int_to_ptr.vmem [resolvable:$true] %s26
      %32 = dma.hbm_to_vmem [thread:$0]  %s25, 1024, %s27, [#allocation5], 128, 128, 8
    $region5: #{tpu_custom_call.1} parent=1 // pred_fallthru
      _
    // Predicated region
    $region6: #{tpu_custom_call.1} parent=1 // pred_check
      _
    $region7: #{tpu_custom_call.1} parent=1 // pred_check_branch
      %34 = sbr.rel (0) target = $region9
    $region8: #{tpu_custom_call.1} parent=1 // pred_region
      %36 = vsyncadd [#allocation8], 0
      %s38 = sshll.u32 %s1, 4
      %s39 = int_to_ptr.hbm [resolvable:$true] %s38
      %s40 = sshll.u32 [#allocation7], 4
      %s41 = int_to_ptr.vmem [resolvable:$true] %s40
      %43 = dma.hbm_to_vmem [thread:$0]  %s39, 128, %s41, [#allocation8]
    $region9: #{tpu_custom_call.1} parent=1 // pred_fallthru
      _
    // Predicated region
    $region10: #{tpu_custom_call.1} parent=1 // pred_check
      _
    $region11: #{tpu_custom_call.1} parent=1 // pred_check_branch
      %45 = sbr.rel (0) target = $region13
    $region12: #{tpu_custom_call.1} parent=1 // pred_region
      %47 = vsyncadd [#allocation8], 0
      %s48 = sshll.u32 %s2, 4
      %s49 = int_to_ptr.hbm [resolvable:$true] %s48
      %s50 = sshll.u32 [#allocation9], 4
      %s51 = int_to_ptr.vmem [resolvable:$true] %s50
      %56 = dma.hbm_to_vmem [thread:$0]  %s49, 2048, %s51, [#allocation8], 128, 128, 8
    $region13: #{tpu_custom_call.1} parent=1 // pred_fallthru
      _
    // Predicated region
    $region14: #{tpu_custom_call.1} parent=1 // pred_check
      _
    $region15: #{tpu_custom_call.1} parent=1 // pred_check_branch
      %58 = sbr.rel (0) target = $region17
    $region16: #{tpu_custom_call.1} parent=1 // pred_region
      %60 = vsyncadd [#allocation11], 0
      %s61 = sshll.u32 %s3, 4
      %s62 = int_to_ptr.hbm [resolvable:$true] %s61
      %s63 = sshll.u32 [#allocation10], 4
      %s64 = int_to_ptr.vmem [resolvable:$true] %s63
      %69 = dma.hbm_to_vmem [thread:$0]  %s62, 6144, %s64, [#allocation11], 384, 384, 24
    $region17: #{tpu_custom_call.1} parent=1 // pred_fallthru
      _
    // Predicated region
    $region18: #{tpu_custom_call.1} parent=1 // pred_check
      _
    $region19: #{tpu_custom_call.1} parent=1 // pred_check_branch
      %71 = sbr.rel (0) target = $region21
    $region20: #{tpu_custom_call.1} parent=1 // pred_region
      %73 = vsyncadd [#allocation11], 0
      %s74 = sshll.u32 %s4, 4
      %s75 = int_to_ptr.hbm [resolvable:$true] %s74
      %s76 = sshll.u32 [#allocation12], 4
      %s77 = int_to_ptr.vmem [resolvable:$true] %s76
      %82 = dma.hbm_to_vmem [thread:$0]  %s75, 6144, %s77, [#allocation11], 384, 384, 24
    $region21: #{tpu_custom_call.1} parent=1 // pred_fallthru
      _
    // Predicated region
    $region22: #{tpu_custom_call.1} parent=1 // pred_check
      _
    $region23: #{tpu_custom_call.1} parent=1 // pred_check_branch
      %84 = sbr.rel (0) target = $region25
    $region24: #{tpu_custom_call.1} parent=1 // pred_region
      %86 = vsyncadd [#allocation14], 0
      %s87 = sshll.u32 %s5, 4
      %s88 = int_to_ptr.hbm [resolvable:$true] %s87
      %s89 = sshll.u32 [#allocation13], 4
      %s90 = int_to_ptr.vmem [resolvable:$true] %s89
      %95 = dma.hbm_to_vmem [thread:$0]  %s88, 2048, %s90, [#allocation14], 128, 128, 8
    $region25: #{tpu_custom_call.1} parent=1 // pred_fallthru
      _
    // Predicated region
    $region26: #{tpu_custom_call.1} parent=1 // pred_check
      _
    $region27: #{tpu_custom_call.1} parent=1 // pred_check_branch
      %97 = sbr.rel (0) target = $region29
    $region28: #{tpu_custom_call.1} parent=1 // pred_region
      %99 = vsyncadd [#allocation14], 0
      %s101 = sshll.u32 %s6, 4
      %s102 = int_to_ptr.hbm [resolvable:$true] %s101
      %s103 = sshll.u32 [#allocation15], 4
      %s104 = int_to_ptr.vmem [resolvable:$true] %s103
      %106 = dma.hbm_to_vmem [thread:$0]  %s102, 384, %s104, [#allocation14]
    $region29: #{tpu_custom_call.1} parent=1 // pred_fallthru
      _
    // Predicated region
    $region30: #{tpu_custom_call.1} parent=1 // pred_check
      _
    $region31: #{tpu_custom_call.1} parent=1 // pred_check_branch
      %108 = sbr.rel (0) target = $region33
    $region32: #{tpu_custom_call.1} parent=1 // pred_region
      %110 = dma.done [#allocation5], 1024
    $region33: #{tpu_custom_call.1} parent=1 // pred_fallthru
      _
    // Predicated region
    $region34: #{tpu_custom_call.1} parent=1 // pred_check
      _
    $region35: #{tpu_custom_call.1} parent=1 // pred_check_branch
      %112 = sbr.rel (0) target = $region37
    $region36: #{tpu_custom_call.1} parent=1 // pred_region
      %114 = dma.done [#allocation8], 128
    $region37: #{tpu_custom_call.1} parent=1 // pred_fallthru
      _
    // Predicated region
    $region38: #{tpu_custom_call.1} parent=1 // pred_check
      _
    $region39: #{tpu_custom_call.1} parent=1 // pred_check_branch
      %116 = sbr.rel (0) target = $region41
    $region40: #{tpu_custom_call.1} parent=1 // pred_region
      %118 = dma.done [#allocation8], 2048
    $region41: #{tpu_custom_call.1} parent=1 // pred_fallthru
      _
    // Predicated region
    $region42: #{tpu_custom_call.1} parent=1 // pred_check
      _
    $region43: #{tpu_custom_call.1} parent=1 // pred_check_branch
      %120 = sbr.rel (0) target = $region45
    $region44: #{tpu_custom_call.1} parent=1 // pred_region
      %122 = dma.done [#allocation11], 6144
    $region45: #{tpu_custom_call.1} parent=1 // pred_fallthru
      _
    // Predicated region
    $region46: #{tpu_custom_call.1} parent=1 // pred_check
      _
    $region47: #{tpu_custom_call.1} parent=1 // pred_check_branch
      %124 = sbr.rel (0) target = $region49
    $region48: #{tpu_custom_call.1} parent=1 // pred_region
      %126 = dma.done [#allocation11], 6144
    $region49: #{tpu_custom_call.1} parent=1 // pred_fallthru
      _
    // Predicated region
    $region50: #{tpu_custom_call.1} parent=1 // pred_check
      _
    $region51: #{tpu_custom_call.1} parent=1 // pred_check_branch
      %128 = sbr.rel (0) target = $region53
    $region52: #{tpu_custom_call.1} parent=1 // pred_region
      %130 = dma.done [#allocation14], 2048
    $region53: #{tpu_custom_call.1} parent=1 // pred_fallthru
      _
    // Predicated region
    $region54: #{tpu_custom_call.1} parent=1 // pred_check
      _
    $region55: #{tpu_custom_call.1} parent=1 // pred_check_branch
      %132 = sbr.rel (0) target = $region57
    $region56: #{tpu_custom_call.1} parent=1 // pred_region
      %134 = dma.done [#allocation14], 384
    $region57: #{tpu_custom_call.1} parent=1 // pred_fallthru
      _
    %v135 = vld [vmem:[#allocation15] ss:$0 sm:$0xff]
    %v136 = vld [vmem:[#allocation15 + $0x1] ss:$0 sm:$0xff]
    %v137 = vld [vmem:[#allocation15 + $0x2] ss:$0 sm:$0xff]
    %s138 = scalar_lea.vmem [#allocation15], 3
    %v139 = vld [vmem:[%s138] ss:$8 sm:$0x7]
    %v140 = vld [vmem:[#allocation15 + $0x4] ss:$0 sm:$0xff]
    %v141 = vld [vmem:[#allocation15 + $0x5] ss:$0 sm:$0xff]
    %v142 = vld [vmem:[#allocation15 + $0x6] ss:$0 sm:$0xff]
    %v143 = vld [vmem:[#allocation15 + $0x7] ss:$0 sm:$0xff]
    %v144 = vld [vmem:[#allocation4] sm:$0xff]
    %v145 = vld [vmem:[#allocation4 + $0x8] sm:$0xff]
    %v146 = vld [vmem:[#allocation4 + $0x10] sm:$0xff]
    %v147 = vld [vmem:[#allocation4 + $0x18] sm:$0xff]
    %v148 = vld [vmem:[#allocation4 + $0x20] sm:$0xff]
    %v149 = vld [vmem:[#allocation4 + $0x28] sm:$0xff]
    %v150 = vld [vmem:[#allocation4 + $0x30] sm:$0xff]
    %v151 = vld [vmem:[#allocation4 + $0x38] sm:$0xff]
    %v152 = vld [vmem:[#allocation9] sm:$0xff]
    %v153 = vld [vmem:[#allocation9 + $0x8] sm:$0xff]
    %v154 = vld [vmem:[#allocation9 + $0x10] sm:$0xff]
    %v155 = vld [vmem:[#allocation9 + $0x18] sm:$0xff]
    %v156 = vld [vmem:[#allocation9 + $0x20] sm:$0xff]
    %v157 = vld [vmem:[#allocation9 + $0x28] sm:$0xff]
    %v158 = vld [vmem:[#allocation9 + $0x30] sm:$0xff]
    %v159 = vld [vmem:[#allocation9 + $0x38] sm:$0xff]
    %v160 = vld [vmem:[#allocation9 + $0x40] sm:$0xff]
    %v161 = vld [vmem:[#allocation9 + $0x48] sm:$0xff]
    %v162 = vld [vmem:[#allocation9 + $0x50] sm:$0xff]
    %v163 = vld [vmem:[#allocation9 + $0x58] sm:$0xff]
    %v164 = vld [vmem:[#allocation9 + $0x60] sm:$0xff]
    %v165 = vld [vmem:[#allocation9 + $0x68] sm:$0xff]
    %v166 = vld [vmem:[#allocation9 + $0x70] sm:$0xff]
    %v167 = vld [vmem:[#allocation9 + $0x78] sm:$0xff]
    %168 = vmatpush.msra.mxu0 %v167
    %169 = vmatpush.msra.mxu0 %v166
    %170 = vmatpush.msra.mxu0 %v165
    %171 = vmatpush.msra.mxu0 %v164
    %172 = vmatpush.msra.mxu0 %v163
    %173 = vmatpush.msra.mxu0 %v162
    %174 = vmatpush.msra.mxu0 %v161
    %175 = vmatpush.msra.mxu0 %v160
    %176 = vmatpush.msra.mxu0 %v159
    %177 = vmatpush.msra.mxu0 %v158
    %178 = vmatpush.msra.mxu0 %v157
    %179 = vmatpush.msra.mxu0 %v156
    %180 = vmatpush.msra.mxu0 %v155
    %181 = vmatpush.msra.mxu0 %v154
    %182 = vmatpush.msra.mxu0 %v153
    %183 = vmatpush.msra.mxu0 %v152
    %184 = vmatmul.f32.gmra.mxu0 %v144
    %v185 = vpop.f32.mrf.mxu0
    %v186 = vadd.f32 %v135, %v185
    %187 = vmatmul.f32.gmra.mxu0 %v145
    %v188 = vpop.f32.mrf.mxu0
    %v189 = vadd.f32 %v135, %v188
    %190 = vmatmul.f32.gmra.mxu0 %v146
    %v191 = vpop.f32.mrf.mxu0
    %v192 = vadd.f32 %v135, %v191
    %193 = vmatmul.f32.gmra.mxu0 %v147
    %v194 = vpop.f32.mrf.mxu0
    %v195 = vadd.f32 %v135, %v194
    %196 = vmatmul.f32.gmra.mxu0 %v148
    %v197 = vpop.f32.mrf.mxu0
    %v198 = vadd.f32 %v135, %v197
    %199 = vmatmul.f32.gmra.mxu0 %v149
    %v200 = vpop.f32.mrf.mxu0
    %v201 = vadd.f32 %v135, %v200
    %202 = vmatmul.f32.gmra.mxu0 %v150
    %v203 = vpop.f32.mrf.mxu0
    %v204 = vadd.f32 %v135, %v203
    %205 = vmatmul.f32.gmra.mxu0 %v151
    %v206 = vpop.f32.mrf.mxu0
    %v207 = vadd.f32 %v135, %v206
    %208 = vdwg.mxu0
    %v209 = vlaneseq
    %v210 = vand.u32 %v209, 127
    %vm211 = vcmp.lt.s32.totalorder %v210, 32
    %v212 = vsel %vm211, %v186, 0.0
    %v213 = vsel %vm211, %v189, 0.0
    %v214 = vsel %vm211, %v192, 0.0
    %v215 = vsel %vm211, %v195, 0.0
    %v216 = vsel %vm211, %v198, 0.0
    %v217 = vsel %vm211, %v201, 0.0
    %v218 = vsel %vm211, %v204, 0.0
    %v219 = vsel %vm211, %v207, 0.0
    %220 = vadd.xlane.f32.xlu0 %v212
    %v221 = vpop.xlane.xlu0 %220
    %222 = vadd.xlane.f32.xlu0 %v213
    %v223 = vpop.xlane.xlu0 %222
    %224 = vadd.xlane.f32.xlu0 %v214
    %v225 = vpop.xlane.xlu0 %224
    %226 = vadd.xlane.f32.xlu0 %v215
    %v227 = vpop.xlane.xlu0 %226
    %228 = vadd.xlane.f32.xlu0 %v216
    %v229 = vpop.xlane.xlu0 %228
    %230 = vadd.xlane.f32.xlu0 %v217
    %v231 = vpop.xlane.xlu0 %230
    %232 = vadd.xlane.f32.xlu0 %v218
    %v233 = vpop.xlane.xlu0 %232
    %234 = vadd.xlane.f32.xlu0 %v219
    %v235 = vpop.xlane.xlu0 %234
    %v236 = vmul.f32 %v221, 0.03125
    %v237 = vmul.f32 %v223, 0.03125
    %v238 = vmul.f32 %v225, 0.03125
    %v239 = vmul.f32 %v227, 0.03125
    %v240 = vmul.f32 %v229, 0.03125
    %v241 = vmul.f32 %v231, 0.03125
    %v242 = vmul.f32 %v233, 0.03125
    %v243 = vmul.f32 %v235, 0.03125
    %v244 = vsub.f32 %v186, %v236
    %v245 = vsub.f32 %v189, %v237
    %v246 = vsub.f32 %v192, %v238
    %v247 = vsub.f32 %v195, %v239
    %v248 = vsub.f32 %v198, %v240
    %v249 = vsub.f32 %v201, %v241
    %v250 = vsub.f32 %v204, %v242
    %v251 = vsub.f32 %v207, %v243
    %v252 = vsel %vm211, %v244, 0.0
    %v253 = vsel %vm211, %v245, 0.0
    %v254 = vsel %vm211, %v246, 0.0
    %v255 = vsel %vm211, %v247, 0.0
    %v256 = vsel %vm211, %v248, 0.0
    %v257 = vsel %vm211, %v249, 0.0
    %v258 = vsel %vm211, %v250, 0.0
    %v259 = vsel %vm211, %v251, 0.0
    %v260 = vmul.f32 %v252, %v252
    %v261 = vmul.f32 %v253, %v253
    %v262 = vmul.f32 %v254, %v254
    %v263 = vmul.f32 %v255, %v255
    %v264 = vmul.f32 %v256, %v256
    %v265 = vmul.f32 %v257, %v257
    %v266 = vmul.f32 %v258, %v258
    %v267 = vmul.f32 %v259, %v259
    %268 = vadd.xlane.f32.xlu0 %v260
    %v269 = vpop.xlane.xlu0 %268
    %270 = vadd.xlane.f32.xlu0 %v261
    %v271 = vpop.xlane.xlu0 %270
    %272 = vadd.xlane.f32.xlu0 %v262
    %v273 = vpop.xlane.xlu0 %272
    %274 = vadd.xlane.f32.xlu0 %v263
    %v275 = vpop.xlane.xlu0 %274
    %276 = vadd.xlane.f32.xlu0 %v264
    %v277 = vpop.xlane.xlu0 %276
    %278 = vadd.xlane.f32.xlu0 %v265
    %v279 = vpop.xlane.xlu0 %278
    %280 = vadd.xlane.f32.xlu0 %v266
    %v281 = vpop.xlane.xlu0 %280
    %282 = vadd.xlane.f32.xlu0 %v267
    %v283 = vpop.xlane.xlu0 %282
    %v284 = vmul.f32 %v269, 0.03125
    %v285 = vmul.f32 %v271, 0.03125
    %v286 = vmul.f32 %v273, 0.03125
    %v287 = vmul.f32 %v275, 0.03125
    %v288 = vmul.f32 %v277, 0.03125
    %v289 = vmul.f32 %v279, 0.03125
    %v290 = vmul.f32 %v281, 0.03125
    %v291 = vmul.f32 %v283, 0.03125
    %v292 = vadd.f32 %v284, 1e-05
    %v293 = vadd.f32 %v285, 1e-05
    %v294 = vadd.f32 %v286, 1e-05
    %v295 = vadd.f32 %v287, 1e-05
    %v296 = vadd.f32 %v288, 1e-05
    %v297 = vadd.f32 %v289, 1e-05
    %v298 = vadd.f32 %v290, 1e-05
    %v299 = vadd.f32 %v291, 1e-05
    %v300 = vrsqrt.pop %v292
    %v301 = vmul.f32 %v300, %v292
    %v302 = vmul.f32 %v301, %v300
    %v303 = vmul.f32 0.5, %v302
    %v304 = vsub.f32 1.5, %v303
    %v305 = vmul.f32 %v300, %v304
    %vm306 = vweird.f32 %v292
    %vm307 = vweird.f32 %v300
    %vm308 = vmor %vm306, %vm307
    %v309 = vsel %vm308, %v300, %v305
    %v310 = vrsqrt.pop %v293
    %v311 = vmul.f32 %v310, %v293
    %v312 = vmul.f32 %v311, %v310
    %v313 = vmul.f32 0.5, %v312
    %v314 = vsub.f32 1.5, %v313
    %v315 = vmul.f32 %v310, %v314
    %vm316 = vweird.f32 %v293
    %vm317 = vweird.f32 %v310
    %vm318 = vmor %vm316, %vm317
    %v319 = vsel %vm318, %v310, %v315
    %v320 = vrsqrt.pop %v294
    %v321 = vmul.f32 %v320, %v294
    %v322 = vmul.f32 %v321, %v320
    %v323 = vmul.f32 0.5, %v322
    %v324 = vsub.f32 1.5, %v323
    %v325 = vmul.f32 %v320, %v324
    %vm326 = vweird.f32 %v294
    %vm327 = vweird.f32 %v320
    %vm328 = vmor %vm326, %vm327
    %v329 = vsel %vm328, %v320, %v325
    %v330 = vrsqrt.pop %v295
    %v331 = vmul.f32 %v330, %v295
    %v332 = vmul.f32 %v331, %v330
    %v333 = vmul.f32 0.5, %v332
    %v334 = vsub.f32 1.5, %v333
    %v335 = vmul.f32 %v330, %v334
    %vm336 = vweird.f32 %v295
    %vm337 = vweird.f32 %v330
    %vm338 = vmor %vm336, %vm337
    %v339 = vsel %vm338, %v330, %v335
    %v340 = vrsqrt.pop %v296
    %v341 = vmul.f32 %v340, %v296
    %v342 = vmul.f32 %v341, %v340
    %v343 = vmul.f32 0.5, %v342
    %v344 = vsub.f32 1.5, %v343
    %v345 = vmul.f32 %v340, %v344
    %vm346 = vweird.f32 %v296
    %vm347 = vweird.f32 %v340
    %vm348 = vmor %vm346, %vm347
    %v349 = vsel %vm348, %v340, %v345
    %v350 = vrsqrt.pop %v297
    %v351 = vmul.f32 %v350, %v297
    %v352 = vmul.f32 %v351, %v350
    %v353 = vmul.f32 0.5, %v352
    %v354 = vsub.f32 1.5, %v353
    %v355 = vmul.f32 %v350, %v354
    %vm356 = vweird.f32 %v297
    %vm357 = vweird.f32 %v350
    %vm358 = vmor %vm356, %vm357
    %v359 = vsel %vm358, %v350, %v355
    %v360 = vrsqrt.pop %v298
    %v361 = vmul.f32 %v360, %v298
    %v362 = vmul.f32 %v361, %v360
    %v363 = vmul.f32 0.5, %v362
    %v364 = vsub.f32 1.5, %v363
    %v365 = vmul.f32 %v360, %v364
    %vm366 = vweird.f32 %v298
    %vm367 = vweird.f32 %v360
    %vm368 = vmor %vm366, %vm367
    %v369 = vsel %vm368, %v360, %v365
    %v370 = vrsqrt.pop %v299
    %v371 = vmul.f32 %v370, %v299
    %v372 = vmul.f32 %v371, %v370
    %v373 = vmul.f32 0.5, %v372
    %v374 = vsub.f32 1.5, %v373
    %v375 = vmul.f32 %v370, %v374
    %vm376 = vweird.f32 %v299
    %vm377 = vweird.f32 %v370
    %vm378 = vmor %vm376, %vm377
    %v379 = vsel %vm378, %v370, %v375
    %v380 = vmul.f32 %v252, %v309
    %v381 = vmul.f32 %v253, %v319
    %v382 = vmul.f32 %v254, %v329
    %v383 = vmul.f32 %v255, %v339
    %v384 = vmul.f32 %v256, %v349
    %v385 = vmul.f32 %v257, %v359
    %v386 = vmul.f32 %v258, %v369
    %v387 = vmul.f32 %v259, %v379
    %v388 = vmul.f32 %v380, %v136
    %v389 = vmul.f32 %v381, %v136
    %v390 = vmul.f32 %v382, %v136
    %v391 = vmul.f32 %v383, %v136
    %v392 = vmul.f32 %v384, %v136
    %v393 = vmul.f32 %v385, %v136
    %v394 = vmul.f32 %v386, %v136
    %v395 = vmul.f32 %v387, %v136
    %v396 = vadd.f32 %v388, %v137
    %v397 = vadd.f32 %v389, %v137
    %v398 = vadd.f32 %v390, %v137
    %v399 = vadd.f32 %v391, %v137
    %v400 = vadd.f32 %v392, %v137
    %v401 = vadd.f32 %v393, %v137
    %v402 = vadd.f32 %v394, %v137
    %v403 = vadd.f32 %v395, %v137
    %v404 = vmax.f32 %v396, 0.0
    %v405 = vmax.f32 %v397, 0.0
    %v406 = vmax.f32 %v398, 0.0
    %v407 = vmax.f32 %v399, 0.0
    %v408 = vmax.f32 %v400, 0.0
    %v409 = vmax.f32 %v401, 0.0
    %v410 = vmax.f32 %v402, 0.0
    %v411 = vmax.f32 %v403, 0.0
    %v412 = vld [vmem:[#allocation10] sm:$0xff]
    %v413 = vld [vmem:[#allocation10 + $0x8] sm:$0xff]
    %v414 = vld [vmem:[#allocation10 + $0x10] sm:$0xff]
    %v415 = vld [vmem:[#allocation10 + $0x18] sm:$0xff]
    %v416 = vld [vmem:[#allocation10 + $0x20] sm:$0xff]
    %v417 = vld [vmem:[#allocation10 + $0x28] sm:$0xff]
    %v418 = vld [vmem:[#allocation10 + $0x30] sm:$0xff]
    %v419 = vld [vmem:[#allocation10 + $0x38] sm:$0xff]
    %v420 = vld [vmem:[#allocation10 + $0x40] sm:$0xff]
    %v421 = vld [vmem:[#allocation10 + $0x48] sm:$0xff]
    %v422 = vld [vmem:[#allocation10 + $0x50] sm:$0xff]
    %v423 = vld [vmem:[#allocation10 + $0x58] sm:$0xff]
    %v424 = vld [vmem:[#allocation10 + $0x60] sm:$0xff]
    %v425 = vld [vmem:[#allocation10 + $0x68] sm:$0xff]
    %v426 = vld [vmem:[#allocation10 + $0x70] sm:$0xff]
    %v427 = vld [vmem:[#allocation10 + $0x78] sm:$0xff]
    %v428 = vld [vmem:[#allocation10 + $0x80] sm:$0xff]
    %v429 = vld [vmem:[#allocation10 + $0x88] sm:$0xff]
    %v430 = vld [vmem:[#allocation10 + $0x90] sm:$0xff]
    %v431 = vld [vmem:[#allocation10 + $0x98] sm:$0xff]
    %v432 = vld [vmem:[#allocation10 + $0xa0] sm:$0xff]
    %v433 = vld [vmem:[#allocation10 + $0xa8] sm:$0xff]
    %v434 = vld [vmem:[#allocation10 + $0xb0] sm:$0xff]
    %v435 = vld [vmem:[#allocation10 + $0xb8] sm:$0xff]
    %v436 = vld [vmem:[#allocation10 + $0xc0] sm:$0xff]
    %v437 = vld [vmem:[#allocation10 + $0xc8] sm:$0xff]
    %v438 = vld [vmem:[#allocation10 + $0xd0] sm:$0xff]
    %v439 = vld [vmem:[#allocation10 + $0xd8] sm:$0xff]
    %v440 = vld [vmem:[#allocation10 + $0xe0] sm:$0xff]
    %v441 = vld [vmem:[#allocation10 + $0xe8] sm:$0xff]
    %v442 = vld [vmem:[#allocation10 + $0xf0] sm:$0xff]
    %v443 = vld [vmem:[#allocation10 + $0xf8] sm:$0xff]
    %v444 = vld [vmem:[#allocation10 + $0x100] sm:$0xff]
    %v445 = vld [vmem:[#allocation10 + $0x108] sm:$0xff]
    %v446 = vld [vmem:[#allocation10 + $0x110] sm:$0xff]
    %v447 = vld [vmem:[#allocation10 + $0x118] sm:$0xff]
    %v448 = vld [vmem:[#allocation10 + $0x120] sm:$0xff]
    %v449 = vld [vmem:[#allocation10 + $0x128] sm:$0xff]
    %v450 = vld [vmem:[#allocation10 + $0x130] sm:$0xff]
    %v451 = vld [vmem:[#allocation10 + $0x138] sm:$0xff]
    %v452 = vld [vmem:[#allocation10 + $0x140] sm:$0xff]
    %v453 = vld [vmem:[#allocation10 + $0x148] sm:$0xff]
    %v454 = vld [vmem:[#allocation10 + $0x150] sm:$0xff]
    %v455 = vld [vmem:[#allocation10 + $0x158] sm:$0xff]
    %v456 = vld [vmem:[#allocation10 + $0x160] sm:$0xff]
    %v457 = vld [vmem:[#allocation10 + $0x168] sm:$0xff]
    %v458 = vld [vmem:[#allocation10 + $0x170] sm:$0xff]
    %v459 = vld [vmem:[#allocation10 + $0x178] sm:$0xff]
    %v461 = vperm.slane %v139, 0
    %v462 = vperm.slane %v139, 1
    %v463 = vperm.slane %v139, 2
    %467 = vmatpush.msra.mxu0 %v457
    %468 = vmatpush.msra.mxu0 %v454
    %469 = vmatpush.msra.mxu0 %v451
    %470 = vmatpush.msra.mxu0 %v448
    %471 = vmatpush.msra.mxu0 %v445
    %472 = vmatpush.msra.mxu0 %v442
    %473 = vmatpush.msra.mxu0 %v439
    %474 = vmatpush.msra.mxu0 %v436
    %475 = vmatpush.msra.mxu0 %v433
    %476 = vmatpush.msra.mxu0 %v430
    %477 = vmatpush.msra.mxu0 %v427
    %478 = vmatpush.msra.mxu0 %v424
    %479 = vmatpush.msra.mxu0 %v421
    %480 = vmatpush.msra.mxu0 %v418
    %481 = vmatpush.msra.mxu0 %v415
    %482 = vmatpush.msra.mxu0 %v412
    %483 = vmatmul.f32.gmra.mxu0 %v404
    %v484 = vpop.f32.mrf.mxu0
    %v485 = vadd.f32 %v461, %v484
    %486 = vmatmul.f32.gmra.mxu0 %v405
    %v487 = vpop.f32.mrf.mxu0
    %v488 = vadd.f32 %v461, %v487
    %489 = vmatmul.f32.gmra.mxu0 %v406
    %v490 = vpop.f32.mrf.mxu0
    %v491 = vadd.f32 %v461, %v490
    %492 = vmatmul.f32.gmra.mxu0 %v407
    %v493 = vpop.f32.mrf.mxu0
    %v494 = vadd.f32 %v461, %v493
    %495 = vmatmul.f32.gmra.mxu0 %v408
    %v496 = vpop.f32.mrf.mxu0
    %v497 = vadd.f32 %v461, %v496
    %498 = vmatmul.f32.gmra.mxu0 %v409
    %v499 = vpop.f32.mrf.mxu0
    %v500 = vadd.f32 %v461, %v499
    %501 = vmatmul.f32.gmra.mxu0 %v410
    %v502 = vpop.f32.mrf.mxu0
    %v503 = vadd.f32 %v461, %v502
    %504 = vmatmul.f32.gmra.mxu0 %v411
    %v505 = vpop.f32.mrf.mxu0
    %v506 = vadd.f32 %v461, %v505
    %507 = vdwg.mxu0
    %508 = vmatpush.msra.mxu0 %v458
    %509 = vmatpush.msra.mxu0 %v455
    %510 = vmatpush.msra.mxu0 %v452
    %511 = vmatpush.msra.mxu0 %v449
    %512 = vmatpush.msra.mxu0 %v446
    %513 = vmatpush.msra.mxu0 %v443
    %514 = vmatpush.msra.mxu0 %v440
    %515 = vmatpush.msra.mxu0 %v437
    %516 = vmatpush.msra.mxu0 %v434
    %517 = vmatpush.msra.mxu0 %v431
    %518 = vmatpush.msra.mxu0 %v428
    %519 = vmatpush.msra.mxu0 %v425
    %520 = vmatpush.msra.mxu0 %v422
    %521 = vmatpush.msra.mxu0 %v419
    %522 = vmatpush.msra.mxu0 %v416
    %523 = vmatpush.msra.mxu0 %v413
    %524 = vmatmul.f32.gmra.mxu0 %v404
    %v525 = vpop.f32.mrf.mxu0
    %v526 = vadd.f32 %v462, %v525
    %527 = vmatmul.f32.gmra.mxu0 %v405
    %v528 = vpop.f32.mrf.mxu0
    %v529 = vadd.f32 %v462, %v528
    %530 = vmatmul.f32.gmra.mxu0 %v406
    %v531 = vpop.f32.mrf.mxu0
    %v532 = vadd.f32 %v462, %v531
    %533 = vmatmul.f32.gmra.mxu0 %v407
    %v534 = vpop.f32.mrf.mxu0
    %v535 = vadd.f32 %v462, %v534
    %536 = vmatmul.f32.gmra.mxu0 %v408
    %v537 = vpop.f32.mrf.mxu0
    %v538 = vadd.f32 %v462, %v537
    %539 = vmatmul.f32.gmra.mxu0 %v409
    %v540 = vpop.f32.mrf.mxu0
    %v541 = vadd.f32 %v462, %v540
    %542 = vmatmul.f32.gmra.mxu0 %v410
    %v543 = vpop.f32.mrf.mxu0
    %v544 = vadd.f32 %v462, %v543
    %545 = vmatmul.f32.gmra.mxu0 %v411
    %v546 = vpop.f32.mrf.mxu0
    %v547 = vadd.f32 %v462, %v546
    %548 = vdwg.mxu0
    %549 = vmatpush.msra.mxu0 %v459
    %550 = vmatpush.msra.mxu0 %v456
    %551 = vmatpush.msra.mxu0 %v453
    %552 = vmatpush.msra.mxu0 %v450
    %553 = vmatpush.msra.mxu0 %v447
    %554 = vmatpush.msra.mxu0 %v444
    %555 = vmatpush.msra.mxu0 %v441
    %556 = vmatpush.msra.mxu0 %v438
    %557 = vmatpush.msra.mxu0 %v435
    %558 = vmatpush.msra.mxu0 %v432
    %559 = vmatpush.msra.mxu0 %v429
    %560 = vmatpush.msra.mxu0 %v426
    %561 = vmatpush.msra.mxu0 %v423
    %562 = vmatpush.msra.mxu0 %v420
    %563 = vmatpush.msra.mxu0 %v417
    %564 = vmatpush.msra.mxu0 %v414
    %565 = vmatmul.f32.gmra.mxu0 %v404
    %v566 = vpop.f32.mrf.mxu0
    %v567 = vadd.f32 %v463, %v566
    %568 = vmatmul.f32.gmra.mxu0 %v405
    %v569 = vpop.f32.mrf.mxu0
    %v570 = vadd.f32 %v463, %v569
    %571 = vmatmul.f32.gmra.mxu0 %v406
    %v572 = vpop.f32.mrf.mxu0
    %v573 = vadd.f32 %v463, %v572
    %574 = vmatmul.f32.gmra.mxu0 %v407
    %v575 = vpop.f32.mrf.mxu0
    %v576 = vadd.f32 %v463, %v575
    %577 = vmatmul.f32.gmra.mxu0 %v408
    %v578 = vpop.f32.mrf.mxu0
    %v579 = vadd.f32 %v463, %v578
    %580 = vmatmul.f32.gmra.mxu0 %v409
    %v581 = vpop.f32.mrf.mxu0
    %v582 = vadd.f32 %v463, %v581
    %583 = vmatmul.f32.gmra.mxu0 %v410
    %v584 = vpop.f32.mrf.mxu0
    %v585 = vadd.f32 %v463, %v584
    %586 = vmatmul.f32.gmra.mxu0 %v411
    %v587 = vpop.f32.mrf.mxu0
    %v588 = vadd.f32 %v463, %v587
    %589 = vdwg.mxu0
    %590 = vst [vmem:[#allocation2] sm:$0xff] %v485
    %591 = vst [vmem:[#allocation2 + $0x8] sm:$0xff] %v526
    %592 = vst [vmem:[#allocation2 + $0x10] sm:$0xff] %v567
    %593 = vst [vmem:[#allocation2 + $0x18] sm:$0xff] %v488
    %594 = vst [vmem:[#allocation2 + $0x20] sm:$0xff] %v529
    %595 = vst [vmem:[#allocation2 + $0x28] sm:$0xff] %v570
    %596 = vst [vmem:[#allocation2 + $0x30] sm:$0xff] %v491
    %597 = vst [vmem:[#allocation2 + $0x38] sm:$0xff] %v532
    %598 = vst [vmem:[#allocation2 + $0x40] sm:$0xff] %v573
    %599 = vst [vmem:[#allocation2 + $0x48] sm:$0xff] %v494
    %600 = vst [vmem:[#allocation2 + $0x50] sm:$0xff] %v535
    %601 = vst [vmem:[#allocation2 + $0x58] sm:$0xff] %v576
    %602 = vst [vmem:[#allocation2 + $0x60] sm:$0xff] %v497
    %603 = vst [vmem:[#allocation2 + $0x68] sm:$0xff] %v538
    %604 = vst [vmem:[#allocation2 + $0x70] sm:$0xff] %v579
    %605 = vst [vmem:[#allocation2 + $0x78] sm:$0xff] %v500
    %606 = vst [vmem:[#allocation2 + $0x80] sm:$0xff] %v541
    %607 = vst [vmem:[#allocation2 + $0x88] sm:$0xff] %v582
    %608 = vst [vmem:[#allocation2 + $0x90] sm:$0xff] %v503
    %609 = vst [vmem:[#allocation2 + $0x98] sm:$0xff] %v544
    %610 = vst [vmem:[#allocation2 + $0xa0] sm:$0xff] %v585
    %611 = vst [vmem:[#allocation2 + $0xa8] sm:$0xff] %v506
    %612 = vst [vmem:[#allocation2 + $0xb0] sm:$0xff] %v547
    %613 = vst [vmem:[#allocation2 + $0xb8] sm:$0xff] %v588
    %v614 = vld [vmem:[#allocation12] sm:$0xff]
    %v615 = vld [vmem:[#allocation12 + $0x8] sm:$0xff]
    %v616 = vld [vmem:[#allocation12 + $0x10] sm:$0xff]
    %v617 = vld [vmem:[#allocation12 + $0x18] sm:$0xff]
    %v618 = vld [vmem:[#allocation12 + $0x20] sm:$0xff]
    %v619 = vld [vmem:[#allocation12 + $0x28] sm:$0xff]
    %v620 = vld [vmem:[#allocation12 + $0x30] sm:$0xff]
    %v621 = vld [vmem:[#allocation12 + $0x38] sm:$0xff]
    %v622 = vld [vmem:[#allocation12 + $0x40] sm:$0xff]
    %v623 = vld [vmem:[#allocation12 + $0x48] sm:$0xff]
    %v624 = vld [vmem:[#allocation12 + $0x50] sm:$0xff]
    %v625 = vld [vmem:[#allocation12 + $0x58] sm:$0xff]
    %v626 = vld [vmem:[#allocation12 + $0x60] sm:$0xff]
    %v627 = vld [vmem:[#allocation12 + $0x68] sm:$0xff]
    %v628 = vld [vmem:[#allocation12 + $0x70] sm:$0xff]
    %v629 = vld [vmem:[#allocation12 + $0x78] sm:$0xff]
    %v630 = vld [vmem:[#allocation12 + $0x80] sm:$0xff]
    %v631 = vld [vmem:[#allocation12 + $0x88] sm:$0xff]
    %v632 = vld [vmem:[#allocation12 + $0x90] sm:$0xff]
    %v633 = vld [vmem:[#allocation12 + $0x98] sm:$0xff]
    %v634 = vld [vmem:[#allocation12 + $0xa0] sm:$0xff]
    %v635 = vld [vmem:[#allocation12 + $0xa8] sm:$0xff]
    %v636 = vld [vmem:[#allocation12 + $0xb0] sm:$0xff]
    %v637 = vld [vmem:[#allocation12 + $0xb8] sm:$0xff]
    %v638 = vld [vmem:[#allocation12 + $0xc0] sm:$0xff]
    %v639 = vld [vmem:[#allocation12 + $0xc8] sm:$0xff]
    %v640 = vld [vmem:[#allocation12 + $0xd0] sm:$0xff]
    %v641 = vld [vmem:[#allocation12 + $0xd8] sm:$0xff]
    %v642 = vld [vmem:[#allocation12 + $0xe0] sm:$0xff]
    %v643 = vld [vmem:[#allocation12 + $0xe8] sm:$0xff]
    %v644 = vld [vmem:[#allocation12 + $0xf0] sm:$0xff]
    %v645 = vld [vmem:[#allocation12 + $0xf8] sm:$0xff]
    %v646 = vld [vmem:[#allocation12 + $0x100] sm:$0xff]
    %v647 = vld [vmem:[#allocation12 + $0x108] sm:$0xff]
    %v648 = vld [vmem:[#allocation12 + $0x110] sm:$0xff]
    %v649 = vld [vmem:[#allocation12 + $0x118] sm:$0xff]
    %v650 = vld [vmem:[#allocation12 + $0x120] sm:$0xff]
    %v651 = vld [vmem:[#allocation12 + $0x128] sm:$0xff]
    %v652 = vld [vmem:[#allocation12 + $0x130] sm:$0xff]
    %v653 = vld [vmem:[#allocation12 + $0x138] sm:$0xff]
    %v654 = vld [vmem:[#allocation12 + $0x140] sm:$0xff]
    %v655 = vld [vmem:[#allocation12 + $0x148] sm:$0xff]
    %v656 = vld [vmem:[#allocation12 + $0x150] sm:$0xff]
    %v657 = vld [vmem:[#allocation12 + $0x158] sm:$0xff]
    %v658 = vld [vmem:[#allocation12 + $0x160] sm:$0xff]
    %v659 = vld [vmem:[#allocation12 + $0x168] sm:$0xff]
    %v660 = vld [vmem:[#allocation12 + $0x170] sm:$0xff]
    %v661 = vld [vmem:[#allocation12 + $0x178] sm:$0xff]
    %v662 = vld [vmem:[#allocation7] sm:$0xff]
    %v663 = vld [vmem:[#allocation2] sm:$0xff]
    %v664 = vld [vmem:[#allocation2 + $0x8] sm:$0xff]
    %v665 = vld [vmem:[#allocation2 + $0x10] sm:$0xff]
    %666 = vmatpush.msra.mxu0 %v659
    %667 = vmatpush.msra.mxu0 %v656
    %668 = vmatpush.msra.mxu0 %v653
    %669 = vmatpush.msra.mxu0 %v650
    %670 = vmatpush.msra.mxu0 %v647
    %671 = vmatpush.msra.mxu0 %v644
    %672 = vmatpush.msra.mxu0 %v641
    %673 = vmatpush.msra.mxu0 %v638
    %674 = vmatpush.msra.mxu0 %v635
    %675 = vmatpush.msra.mxu0 %v632
    %676 = vmatpush.msra.mxu0 %v629
    %677 = vmatpush.msra.mxu0 %v626
    %678 = vmatpush.msra.mxu0 %v623
    %679 = vmatpush.msra.mxu0 %v620
    %680 = vmatpush.msra.mxu0 %v617
    %681 = vmatpush.msra.mxu0 %v614
    %682 = vmatmul.f32.gmra.mxu0 %v662
    %v683 = vpop.f32.mrf.mxu0
    %v684 = vadd.f32 0.0, %v683
    %685 = vdwg.mxu0
    %686 = vmatpush.msra.mxu0 %v660
    %687 = vmatpush.msra.mxu0 %v657
    %688 = vmatpush.msra.mxu0 %v654
    %689 = vmatpush.msra.mxu0 %v651
    %690 = vmatpush.msra.mxu0 %v648
    %691 = vmatpush.msra.mxu0 %v645
    %692 = vmatpush.msra.mxu0 %v642
    %693 = vmatpush.msra.mxu0 %v639
    %694 = vmatpush.msra.mxu0 %v636
    %695 = vmatpush.msra.mxu0 %v633
    %696 = vmatpush.msra.mxu0 %v630
    %697 = vmatpush.msra.mxu0 %v627
    %698 = vmatpush.msra.mxu0 %v624
    %699 = vmatpush.msra.mxu0 %v621
    %700 = vmatpush.msra.mxu0 %v618
    %701 = vmatpush.msra.mxu0 %v615
    %702 = vmatmul.f32.gmra.mxu0 %v662
    %v703 = vpop.f32.mrf.mxu0
    %v704 = vadd.f32 0.0, %v703
    %705 = vdwg.mxu0
    %706 = vmatpush.msra.mxu0 %v661
    %707 = vmatpush.msra.mxu0 %v658
    %708 = vmatpush.msra.mxu0 %v655
    %709 = vmatpush.msra.mxu0 %v652
    %710 = vmatpush.msra.mxu0 %v649
    %711 = vmatpush.msra.mxu0 %v646
    %712 = vmatpush.msra.mxu0 %v643
    %713 = vmatpush.msra.mxu0 %v640
    %714 = vmatpush.msra.mxu0 %v637
    %715 = vmatpush.msra.mxu0 %v634
    %716 = vmatpush.msra.mxu0 %v631
    %717 = vmatpush.msra.mxu0 %v628
    %718 = vmatpush.msra.mxu0 %v625
    %719 = vmatpush.msra.mxu0 %v622
    %720 = vmatpush.msra.mxu0 %v619
    %721 = vmatpush.msra.mxu0 %v616
    %722 = vmatmul.f32.gmra.mxu0 %v662
    %v723 = vpop.f32.mrf.mxu0
    %v724 = vadd.f32 0.0, %v723
    %725 = vdwg.mxu0
    %v726 = vadd.f32 %v663, %v684
    %v727 = vxor.u32 %v726, 2147483648
    %v728 = vmul.f32 %v727, 1.442695
    %v729 = vpow.pop %v728
    %v730 = vadd.f32 %v729, 1.0
    %v731 = vrcp.pop %v730
    %v732 = vmul.f32 %v730, %v731
    %v733 = vsub.f32 1.0, %v732
    %v734 = vmul.f32 %v731, %v733
    %v735 = vadd.f32 %v731, %v734
    %vm736 = vweird.f32 %v730
    %vm737 = vweird.f32 %v731
    %vm738 = vmor %vm736, %vm737
    %v739 = vsel %vm738, %v731, %v735
    %v740 = vand.u32 2147483647, %v730
    %vm741 = vcmp.eq.f32.partialorder %v740, 8.507059e+37
    %v742 = vand.u32 %v730, 2147483648
    %v743 = vor.u32 1.1754944e-38, %v742
    %v744 = vsel %vm741, %v743, %v739
    %v745 = vmul.f32 1.0, %v744
    %v746 = vadd.f32 %v664, %v704
    %v747 = vxor.u32 %v746, 2147483648
    %v748 = vmul.f32 %v747, 1.442695
    %v749 = vpow.pop %v748
    %v750 = vadd.f32 %v749, 1.0
    %v751 = vrcp.pop %v750
    %v752 = vmul.f32 %v750, %v751
    %v753 = vsub.f32 1.0, %v752
    %v754 = vmul.f32 %v751, %v753
    %v755 = vadd.f32 %v751, %v754
    %vm756 = vweird.f32 %v750
    %vm757 = vweird.f32 %v751
    %vm758 = vmor %vm756, %vm757
    %v759 = vsel %vm758, %v751, %v755
    %v760 = vand.u32 2147483647, %v750
    %vm761 = vcmp.eq.f32.partialorder %v760, 8.507059e+37
    %v762 = vand.u32 %v750, 2147483648
    %v763 = vor.u32 1.1754944e-38, %v762
    %v764 = vsel %vm761, %v763, %v759
    %v765 = vmul.f32 1.0, %v764
    %v766 = vadd.f32 %v724, %v140
    %v767 = vmul.f32 %v745, %v766
    %v768 = vadd.f32 %v665, %v767
    %v769 = vtanh.pop %v768
    %v770 = vsub.f32 %v662, %v769
    %v771 = vmul.f32 %v765, %v770
    %v772 = vadd.f32 %v769, %v771
    %773 = vst [vmem:[#allocation3] sm:$0xff] %v772
    %v774 = vld [vmem:[#allocation2 + $0x18] sm:$0xff]
    %v775 = vld [vmem:[#allocation2 + $0x20] sm:$0xff]
    %v776 = vld [vmem:[#allocation2 + $0x28] sm:$0xff]
    %777 = vmatpush.msra.mxu0 %v659
    %778 = vmatpush.msra.mxu0 %v656
    %779 = vmatpush.msra.mxu0 %v653
    %780 = vmatpush.msra.mxu0 %v650
    %781 = vmatpush.msra.mxu0 %v647
    %782 = vmatpush.msra.mxu0 %v644
    %783 = vmatpush.msra.mxu0 %v641
    %784 = vmatpush.msra.mxu0 %v638
    %785 = vmatpush.msra.mxu0 %v635
    %786 = vmatpush.msra.mxu0 %v632
    %787 = vmatpush.msra.mxu0 %v629
    %788 = vmatpush.msra.mxu0 %v626
    %789 = vmatpush.msra.mxu0 %v623
    %790 = vmatpush.msra.mxu0 %v620
    %791 = vmatpush.msra.mxu0 %v617
    %792 = vmatpush.msra.mxu0 %v614
    %793 = vmatmul.f32.gmra.mxu0 %v772
    %v794 = vpop.f32.mrf.mxu0
    %v795 = vadd.f32 0.0, %v794
    %796 = vdwg.mxu0
    %797 = vmatpush.msra.mxu0 %v660
    %798 = vmatpush.msra.mxu0 %v657
    %799 = vmatpush.msra.mxu0 %v654
    %800 = vmatpush.msra.mxu0 %v651
    %801 = vmatpush.msra.mxu0 %v648
    %802 = vmatpush.msra.mxu0 %v645
    %803 = vmatpush.msra.mxu0 %v642
    %804 = vmatpush.msra.mxu0 %v639
    %805 = vmatpush.msra.mxu0 %v636
    %806 = vmatpush.msra.mxu0 %v633
    %807 = vmatpush.msra.mxu0 %v630
    %808 = vmatpush.msra.mxu0 %v627
    %809 = vmatpush.msra.mxu0 %v624
    %810 = vmatpush.msra.mxu0 %v621
    %811 = vmatpush.msra.mxu0 %v618
    %812 = vmatpush.msra.mxu0 %v615
    %813 = vmatmul.f32.gmra.mxu0 %v772
    %v814 = vpop.f32.mrf.mxu0
    %v815 = vadd.f32 0.0, %v814
    %816 = vdwg.mxu0
    %817 = vmatpush.msra.mxu0 %v661
    %818 = vmatpush.msra.mxu0 %v658
    %819 = vmatpush.msra.mxu0 %v655
    %820 = vmatpush.msra.mxu0 %v652
    %821 = vmatpush.msra.mxu0 %v649
    %822 = vmatpush.msra.mxu0 %v646
    %823 = vmatpush.msra.mxu0 %v643
    %824 = vmatpush.msra.mxu0 %v640
    %825 = vmatpush.msra.mxu0 %v637
    %826 = vmatpush.msra.mxu0 %v634
    %827 = vmatpush.msra.mxu0 %v631
    %828 = vmatpush.msra.mxu0 %v628
    %829 = vmatpush.msra.mxu0 %v625
    %830 = vmatpush.msra.mxu0 %v622
    %831 = vmatpush.msra.mxu0 %v619
    %832 = vmatpush.msra.mxu0 %v616
    %833 = vmatmul.f32.gmra.mxu0 %v772
    %v834 = vpop.f32.mrf.mxu0
    %v835 = vadd.f32 0.0, %v834
    %836 = vdwg.mxu0
    %v837 = vadd.f32 %v774, %v795
    %v838 = vxor.u32 %v837, 2147483648
    %v839 = vmul.f32 %v838, 1.442695
    %v840 = vpow.pop %v839
    %v841 = vadd.f32 %v840, 1.0
    %v842 = vrcp.pop %v841
    %v843 = vmul.f32 %v841, %v842
    %v844 = vsub.f32 1.0, %v843
    %v845 = vmul.f32 %v842, %v844
    %v846 = vadd.f32 %v842, %v845
    %vm847 = vweird.f32 %v841
    %vm848 = vweird.f32 %v842
    %vm849 = vmor %vm847, %vm848
    %v850 = vsel %vm849, %v842, %v846
    %v851 = vand.u32 2147483647, %v841
    %vm852 = vcmp.eq.f32.partialorder %v851, 8.507059e+37
    %v853 = vand.u32 %v841, 2147483648
    %v854 = vor.u32 1.1754944e-38, %v853
    %v855 = vsel %vm852, %v854, %v850
    %v856 = vmul.f32 1.0, %v855
    %v857 = vadd.f32 %v775, %v815
    %v858 = vxor.u32 %v857, 2147483648
    %v859 = vmul.f32 %v858, 1.442695
    %v860 = vpow.pop %v859
    %v861 = vadd.f32 %v860, 1.0
    %v862 = vrcp.pop %v861
    %v863 = vmul.f32 %v861, %v862
    %v864 = vsub.f32 1.0, %v863
    %v865 = vmul.f32 %v862, %v864
    %v866 = vadd.f32 %v862, %v865
    %vm867 = vweird.f32 %v861
    %vm868 = vweird.f32 %v862
    %vm869 = vmor %vm867, %vm868
    %v870 = vsel %vm869, %v862, %v866
    %v871 = vand.u32 2147483647, %v861
    %vm872 = vcmp.eq.f32.partialorder %v871, 8.507059e+37
    %v873 = vand.u32 %v861, 2147483648
    %v874 = vor.u32 1.1754944e-38, %v873
    %v875 = vsel %vm872, %v874, %v870
    %v876 = vmul.f32 1.0, %v875
    %v877 = vadd.f32 %v835, %v140
    %v878 = vmul.f32 %v856, %v877
    %v879 = vadd.f32 %v776, %v878
    %v880 = vtanh.pop %v879
    %v881 = vsub.f32 %v772, %v880
    %v882 = vmul.f32 %v876, %v881
    %v883 = vadd.f32 %v880, %v882
    %884 = vst [vmem:[#allocation3 + $0x8] sm:$0xff] %v883
    %v885 = vld [vmem:[#allocation2 + $0x30] sm:$0xff]
    %v886 = vld [vmem:[#allocation2 + $0x38] sm:$0xff]
    %v887 = vld [vmem:[#allocation2 + $0x40] sm:$0xff]
    %888 = vmatpush.msra.mxu0 %v659
    %889 = vmatpush.msra.mxu0 %v656
    %890 = vmatpush.msra.mxu0 %v653
    %891 = vmatpush.msra.mxu0 %v650
    %892 = vmatpush.msra.mxu0 %v647
    %893 = vmatpush.msra.mxu0 %v644
    %894 = vmatpush.msra.mxu0 %v641
    %895 = vmatpush.msra.mxu0 %v638
    %896 = vmatpush.msra.mxu0 %v635
    %897 = vmatpush.msra.mxu0 %v632
    %898 = vmatpush.msra.mxu0 %v629
    %899 = vmatpush.msra.mxu0 %v626
    %900 = vmatpush.msra.mxu0 %v623
    %901 = vmatpush.msra.mxu0 %v620
    %902 = vmatpush.msra.mxu0 %v617
    %903 = vmatpush.msra.mxu0 %v614
    %904 = vmatmul.f32.gmra.mxu0 %v883
    %v905 = vpop.f32.mrf.mxu0
    %v906 = vadd.f32 0.0, %v905
    %907 = vdwg.mxu0
    %908 = vmatpush.msra.mxu0 %v660
    %909 = vmatpush.msra.mxu0 %v657
    %910 = vmatpush.msra.mxu0 %v654
    %911 = vmatpush.msra.mxu0 %v651
    %912 = vmatpush.msra.mxu0 %v648
    %913 = vmatpush.msra.mxu0 %v645
    %914 = vmatpush.msra.mxu0 %v642
    %915 = vmatpush.msra.mxu0 %v639
    %916 = vmatpush.msra.mxu0 %v636
    %917 = vmatpush.msra.mxu0 %v633
    %918 = vmatpush.msra.mxu0 %v630
    %919 = vmatpush.msra.mxu0 %v627
    %920 = vmatpush.msra.mxu0 %v624
    %921 = vmatpush.msra.mxu0 %v621
    %922 = vmatpush.msra.mxu0 %v618
    %923 = vmatpush.msra.mxu0 %v615
    %924 = vmatmul.f32.gmra.mxu0 %v883
    %v925 = vpop.f32.mrf.mxu0
    %v926 = vadd.f32 0.0, %v925
    %927 = vdwg.mxu0
    %928 = vmatpush.msra.mxu0 %v661
    %929 = vmatpush.msra.mxu0 %v658
    %930 = vmatpush.msra.mxu0 %v655
    %931 = vmatpush.msra.mxu0 %v652
    %932 = vmatpush.msra.mxu0 %v649
    %933 = vmatpush.msra.mxu0 %v646
    %934 = vmatpush.msra.mxu0 %v643
    %935 = vmatpush.msra.mxu0 %v640
    %936 = vmatpush.msra.mxu0 %v637
    %937 = vmatpush.msra.mxu0 %v634
    %938 = vmatpush.msra.mxu0 %v631
    %939 = vmatpush.msra.mxu0 %v628
    %940 = vmatpush.msra.mxu0 %v625
    %941 = vmatpush.msra.mxu0 %v622
    %942 = vmatpush.msra.mxu0 %v619
    %943 = vmatpush.msra.mxu0 %v616
    %944 = vmatmul.f32.gmra.mxu0 %v883
    %v945 = vpop.f32.mrf.mxu0
    %v946 = vadd.f32 0.0, %v945
    %947 = vdwg.mxu0
    %v948 = vadd.f32 %v885, %v906
    %v949 = vxor.u32 %v948, 2147483648
    %v950 = vmul.f32 %v949, 1.442695
    %v951 = vpow.pop %v950
    %v952 = vadd.f32 %v951, 1.0
    %v953 = vrcp.pop %v952
    %v954 = vmul.f32 %v952, %v953
    %v955 = vsub.f32 1.0, %v954
    %v956 = vmul.f32 %v953, %v955
    %v957 = vadd.f32 %v953, %v956
    %vm958 = vweird.f32 %v952
    %vm959 = vweird.f32 %v953
    %vm960 = vmor %vm958, %vm959
    %v961 = vsel %vm960, %v953, %v957
    %v962 = vand.u32 2147483647, %v952
    %vm963 = vcmp.eq.f32.partialorder %v962, 8.507059e+37
    %v964 = vand.u32 %v952, 2147483648
    %v965 = vor.u32 1.1754944e-38, %v964
    %v966 = vsel %vm963, %v965, %v961
    %v967 = vmul.f32 1.0, %v966
    %v968 = vadd.f32 %v886, %v926
    %v969 = vxor.u32 %v968, 2147483648
    %v970 = vmul.f32 %v969, 1.442695
    %v971 = vpow.pop %v970
    %v972 = vadd.f32 %v971, 1.0
    %v973 = vrcp.pop %v972
    %v974 = vmul.f32 %v972, %v973
    %v975 = vsub.f32 1.0, %v974
    %v976 = vmul.f32 %v973, %v975
    %v977 = vadd.f32 %v973, %v976
    %vm978 = vweird.f32 %v972
    %vm979 = vweird.f32 %v973
    %vm980 = vmor %vm978, %vm979
    %v981 = vsel %vm980, %v973, %v977
    %v982 = vand.u32 2147483647, %v972
    %vm983 = vcmp.eq.f32.partialorder %v982, 8.507059e+37
    %v984 = vand.u32 %v972, 2147483648
    %v985 = vor.u32 1.1754944e-38, %v984
    %v986 = vsel %vm983, %v985, %v981
    %v987 = vmul.f32 1.0, %v986
    %v988 = vadd.f32 %v946, %v140
    %v989 = vmul.f32 %v967, %v988
    %v990 = vadd.f32 %v887, %v989
    %v991 = vtanh.pop %v990
    %v992 = vsub.f32 %v883, %v991
    %v993 = vmul.f32 %v987, %v992
    %v994 = vadd.f32 %v991, %v993
    %995 = vst [vmem:[#allocation3 + $0x10] sm:$0xff] %v994
    %v996 = vld [vmem:[#allocation2 + $0x48] sm:$0xff]
    %v997 = vld [vmem:[#allocation2 + $0x50] sm:$0xff]
    %v998 = vld [vmem:[#allocation2 + $0x58] sm:$0xff]
    %999 = vmatpush.msra.mxu0 %v659
    %1000 = vmatpush.msra.mxu0 %v656
    %1001 = vmatpush.msra.mxu0 %v653
    %1002 = vmatpush.msra.mxu0 %v650
    %1003 = vmatpush.msra.mxu0 %v647
    %1004 = vmatpush.msra.mxu0 %v644
    %1005 = vmatpush.msra.mxu0 %v641
    %1006 = vmatpush.msra.mxu0 %v638
    %1007 = vmatpush.msra.mxu0 %v635
    %1008 = vmatpush.msra.mxu0 %v632
    %1009 = vmatpush.msra.mxu0 %v629
    %1010 = vmatpush.msra.mxu0 %v626
    %1011 = vmatpush.msra.mxu0 %v623
    %1012 = vmatpush.msra.mxu0 %v620
    %1013 = vmatpush.msra.mxu0 %v617
    %1014 = vmatpush.msra.mxu0 %v614
    %1015 = vmatmul.f32.gmra.mxu0 %v994
    %v1016 = vpop.f32.mrf.mxu0
    %v1017 = vadd.f32 0.0, %v1016
    %1018 = vdwg.mxu0
    %1019 = vmatpush.msra.mxu0 %v660
    %1020 = vmatpush.msra.mxu0 %v657
    %1021 = vmatpush.msra.mxu0 %v654
    %1022 = vmatpush.msra.mxu0 %v651
    %1023 = vmatpush.msra.mxu0 %v648
    %1024 = vmatpush.msra.mxu0 %v645
    %1025 = vmatpush.msra.mxu0 %v642
    %1026 = vmatpush.msra.mxu0 %v639
    %1027 = vmatpush.msra.mxu0 %v636
    %1028 = vmatpush.msra.mxu0 %v633
    %1029 = vmatpush.msra.mxu0 %v630
    %1030 = vmatpush.msra.mxu0 %v627
    %1031 = vmatpush.msra.mxu0 %v624
    %1032 = vmatpush.msra.mxu0 %v621
    %1033 = vmatpush.msra.mxu0 %v618
    %1034 = vmatpush.msra.mxu0 %v615
    %1035 = vmatmul.f32.gmra.mxu0 %v994
    %v1036 = vpop.f32.mrf.mxu0
    %v1037 = vadd.f32 0.0, %v1036
    %1038 = vdwg.mxu0
    %1039 = vmatpush.msra.mxu0 %v661
    %1040 = vmatpush.msra.mxu0 %v658
    %1041 = vmatpush.msra.mxu0 %v655
    %1042 = vmatpush.msra.mxu0 %v652
    %1043 = vmatpush.msra.mxu0 %v649
    %1044 = vmatpush.msra.mxu0 %v646
    %1045 = vmatpush.msra.mxu0 %v643
    %1046 = vmatpush.msra.mxu0 %v640
    %1047 = vmatpush.msra.mxu0 %v637
    %1048 = vmatpush.msra.mxu0 %v634
    %1049 = vmatpush.msra.mxu0 %v631
    %1050 = vmatpush.msra.mxu0 %v628
    %1051 = vmatpush.msra.mxu0 %v625
    %1052 = vmatpush.msra.mxu0 %v622
    %1053 = vmatpush.msra.mxu0 %v619
    %1054 = vmatpush.msra.mxu0 %v616
    %1055 = vmatmul.f32.gmra.mxu0 %v994
    %v1056 = vpop.f32.mrf.mxu0
    %v1057 = vadd.f32 0.0, %v1056
    %1058 = vdwg.mxu0
    %v1059 = vadd.f32 %v996, %v1017
    %v1060 = vxor.u32 %v1059, 2147483648
    %v1061 = vmul.f32 %v1060, 1.442695
    %v1062 = vpow.pop %v1061
    %v1063 = vadd.f32 %v1062, 1.0
    %v1064 = vrcp.pop %v1063
    %v1065 = vmul.f32 %v1063, %v1064
    %v1066 = vsub.f32 1.0, %v1065
    %v1067 = vmul.f32 %v1064, %v1066
    %v1068 = vadd.f32 %v1064, %v1067
    %vm1069 = vweird.f32 %v1063
    %vm1070 = vweird.f32 %v1064
    %vm1071 = vmor %vm1069, %vm1070
    %v1072 = vsel %vm1071, %v1064, %v1068
    %v1073 = vand.u32 2147483647, %v1063
    %vm1074 = vcmp.eq.f32.partialorder %v1073, 8.507059e+37
    %v1075 = vand.u32 %v1063, 2147483648
    %v1076 = vor.u32 1.1754944e-38, %v1075
    %v1077 = vsel %vm1074, %v1076, %v1072
    %v1078 = vmul.f32 1.0, %v1077
    %v1079 = vadd.f32 %v997, %v1037
    %v1080 = vxor.u32 %v1079, 2147483648
    %v1081 = vmul.f32 %v1080, 1.442695
    %v1082 = vpow.pop %v1081
    %v1083 = vadd.f32 %v1082, 1.0
    %v1084 = vrcp.pop %v1083
    %v1085 = vmul.f32 %v1083, %v1084
    %v1086 = vsub.f32 1.0, %v1085
    %v1087 = vmul.f32 %v1084, %v1086
    %v1088 = vadd.f32 %v1084, %v1087
    %vm1089 = vweird.f32 %v1083
    %vm1090 = vweird.f32 %v1084
    %vm1091 = vmor %vm1089, %vm1090
    %v1092 = vsel %vm1091, %v1084, %v1088
    %v1093 = vand.u32 2147483647, %v1083
    %vm1094 = vcmp.eq.f32.partialorder %v1093, 8.507059e+37
    %v1095 = vand.u32 %v1083, 2147483648
    %v1096 = vor.u32 1.1754944e-38, %v1095
    %v1097 = vsel %vm1094, %v1096, %v1092
    %v1098 = vmul.f32 1.0, %v1097
    %v1099 = vadd.f32 %v1057, %v140
    %v1100 = vmul.f32 %v1078, %v1099
    %v1101 = vadd.f32 %v998, %v1100
    %v1102 = vtanh.pop %v1101
    %v1103 = vsub.f32 %v994, %v1102
    %v1104 = vmul.f32 %v1098, %v1103
    %v1105 = vadd.f32 %v1102, %v1104
    %1106 = vst [vmem:[#allocation3 + $0x18] sm:$0xff] %v1105
    %v1107 = vld [vmem:[#allocation2 + $0x60] sm:$0xff]
    %v1108 = vld [vmem:[#allocation2 + $0x68] sm:$0xff]
    %v1109 = vld [vmem:[#allocation2 + $0x70] sm:$0xff]
    %1110 = vmatpush.msra.mxu0 %v659
    %1111 = vmatpush.msra.mxu0 %v656
    %1112 = vmatpush.msra.mxu0 %v653
    %1113 = vmatpush.msra.mxu0 %v650
    %1114 = vmatpush.msra.mxu0 %v647
    %1115 = vmatpush.msra.mxu0 %v644
    %1116 = vmatpush.msra.mxu0 %v641
    %1117 = vmatpush.msra.mxu0 %v638
    %1118 = vmatpush.msra.mxu0 %v635
    %1119 = vmatpush.msra.mxu0 %v632
    %1120 = vmatpush.msra.mxu0 %v629
    %1121 = vmatpush.msra.mxu0 %v626
    %1122 = vmatpush.msra.mxu0 %v623
    %1123 = vmatpush.msra.mxu0 %v620
    %1124 = vmatpush.msra.mxu0 %v617
    %1125 = vmatpush.msra.mxu0 %v614
    %1126 = vmatmul.f32.gmra.mxu0 %v1105
    %v1127 = vpop.f32.mrf.mxu0
    %v1128 = vadd.f32 0.0, %v1127
    %1129 = vdwg.mxu0
    %1130 = vmatpush.msra.mxu0 %v660
    %1131 = vmatpush.msra.mxu0 %v657
    %1132 = vmatpush.msra.mxu0 %v654
    %1133 = vmatpush.msra.mxu0 %v651
    %1134 = vmatpush.msra.mxu0 %v648
    %1135 = vmatpush.msra.mxu0 %v645
    %1136 = vmatpush.msra.mxu0 %v642
    %1137 = vmatpush.msra.mxu0 %v639
    %1138 = vmatpush.msra.mxu0 %v636
    %1139 = vmatpush.msra.mxu0 %v633
    %1140 = vmatpush.msra.mxu0 %v630
    %1141 = vmatpush.msra.mxu0 %v627
    %1142 = vmatpush.msra.mxu0 %v624
    %1143 = vmatpush.msra.mxu0 %v621
    %1144 = vmatpush.msra.mxu0 %v618
    %1145 = vmatpush.msra.mxu0 %v615
    %1146 = vmatmul.f32.gmra.mxu0 %v1105
    %v1147 = vpop.f32.mrf.mxu0
    %v1148 = vadd.f32 0.0, %v1147
    %1149 = vdwg.mxu0
    %1150 = vmatpush.msra.mxu0 %v661
    %1151 = vmatpush.msra.mxu0 %v658
    %1152 = vmatpush.msra.mxu0 %v655
    %1153 = vmatpush.msra.mxu0 %v652
    %1154 = vmatpush.msra.mxu0 %v649
    %1155 = vmatpush.msra.mxu0 %v646
    %1156 = vmatpush.msra.mxu0 %v643
    %1157 = vmatpush.msra.mxu0 %v640
    %1158 = vmatpush.msra.mxu0 %v637
    %1159 = vmatpush.msra.mxu0 %v634
    %1160 = vmatpush.msra.mxu0 %v631
    %1161 = vmatpush.msra.mxu0 %v628
    %1162 = vmatpush.msra.mxu0 %v625
    %1163 = vmatpush.msra.mxu0 %v622
    %1164 = vmatpush.msra.mxu0 %v619
    %1165 = vmatpush.msra.mxu0 %v616
    %1166 = vmatmul.f32.gmra.mxu0 %v1105
    %v1167 = vpop.f32.mrf.mxu0
    %v1168 = vadd.f32 0.0, %v1167
    %1169 = vdwg.mxu0
    %v1170 = vadd.f32 %v1107, %v1128
    %v1171 = vxor.u32 %v1170, 2147483648
    %v1172 = vmul.f32 %v1171, 1.442695
    %v1173 = vpow.pop %v1172
    %v1174 = vadd.f32 %v1173, 1.0
    %v1175 = vrcp.pop %v1174
    %v1176 = vmul.f32 %v1174, %v1175
    %v1177 = vsub.f32 1.0, %v1176
    %v1178 = vmul.f32 %v1175, %v1177
    %v1179 = vadd.f32 %v1175, %v1178
    %vm1180 = vweird.f32 %v1174
    %vm1181 = vweird.f32 %v1175
    %vm1182 = vmor %vm1180, %vm1181
    %v1183 = vsel %vm1182, %v1175, %v1179
    %v1184 = vand.u32 2147483647, %v1174
    %vm1185 = vcmp.eq.f32.partialorder %v1184, 8.507059e+37
    %v1186 = vand.u32 %v1174, 2147483648
    %v1187 = vor.u32 1.1754944e-38, %v1186
    %v1188 = vsel %vm1185, %v1187, %v1183
    %v1189 = vmul.f32 1.0, %v1188
    %v1190 = vadd.f32 %v1108, %v1148
    %v1191 = vxor.u32 %v1190, 2147483648
    %v1192 = vmul.f32 %v1191, 1.442695
    %v1193 = vpow.pop %v1192
    %v1194 = vadd.f32 %v1193, 1.0
    %v1195 = vrcp.pop %v1194
    %v1196 = vmul.f32 %v1194, %v1195
    %v1197 = vsub.f32 1.0, %v1196
    %v1198 = vmul.f32 %v1195, %v1197
    %v1199 = vadd.f32 %v1195, %v1198
    %vm1200 = vweird.f32 %v1194
    %vm1201 = vweird.f32 %v1195
    %vm1202 = vmor %vm1200, %vm1201
    %v1203 = vsel %vm1202, %v1195, %v1199
    %v1204 = vand.u32 2147483647, %v1194
    %vm1205 = vcmp.eq.f32.partialorder %v1204, 8.507059e+37
    %v1206 = vand.u32 %v1194, 2147483648
    %v1207 = vor.u32 1.1754944e-38, %v1206
    %v1208 = vsel %vm1205, %v1207, %v1203
    %v1209 = vmul.f32 1.0, %v1208
    %v1210 = vadd.f32 %v1168, %v140
    %v1211 = vmul.f32 %v1189, %v1210
    %v1212 = vadd.f32 %v1109, %v1211
    %v1213 = vtanh.pop %v1212
    %v1214 = vsub.f32 %v1105, %v1213
    %v1215 = vmul.f32 %v1209, %v1214
    %v1216 = vadd.f32 %v1213, %v1215
    %1217 = vst [vmem:[#allocation3 + $0x20] sm:$0xff] %v1216
    %v1218 = vld [vmem:[#allocation2 + $0x78] sm:$0xff]
    %v1219 = vld [vmem:[#allocation2 + $0x80] sm:$0xff]
    %v1220 = vld [vmem:[#allocation2 + $0x88] sm:$0xff]
    %1221 = vmatpush.msra.mxu0 %v659
    %1222 = vmatpush.msra.mxu0 %v656
    %1223 = vmatpush.msra.mxu0 %v653
    %1224 = vmatpush.msra.mxu0 %v650
    %1225 = vmatpush.msra.mxu0 %v647
    %1226 = vmatpush.msra.mxu0 %v644
    %1227 = vmatpush.msra.mxu0 %v641
    %1228 = vmatpush.msra.mxu0 %v638
    %1229 = vmatpush.msra.mxu0 %v635
    %1230 = vmatpush.msra.mxu0 %v632
    %1231 = vmatpush.msra.mxu0 %v629
    %1232 = vmatpush.msra.mxu0 %v626
    %1233 = vmatpush.msra.mxu0 %v623
    %1234 = vmatpush.msra.mxu0 %v620
    %1235 = vmatpush.msra.mxu0 %v617
    %1236 = vmatpush.msra.mxu0 %v614
    %1237 = vmatmul.f32.gmra.mxu0 %v1216
    %v1238 = vpop.f32.mrf.mxu0
    %v1239 = vadd.f32 0.0, %v1238
    %1240 = vdwg.mxu0
    %1241 = vmatpush.msra.mxu0 %v660
    %1242 = vmatpush.msra.mxu0 %v657
    %1243 = vmatpush.msra.mxu0 %v654
    %1244 = vmatpush.msra.mxu0 %v651
    %1245 = vmatpush.msra.mxu0 %v648
    %1246 = vmatpush.msra.mxu0 %v645
    %1247 = vmatpush.msra.mxu0 %v642
    %1248 = vmatpush.msra.mxu0 %v639
    %1249 = vmatpush.msra.mxu0 %v636
    %1250 = vmatpush.msra.mxu0 %v633
    %1251 = vmatpush.msra.mxu0 %v630
    %1252 = vmatpush.msra.mxu0 %v627
    %1253 = vmatpush.msra.mxu0 %v624
    %1254 = vmatpush.msra.mxu0 %v621
    %1255 = vmatpush.msra.mxu0 %v618
    %1256 = vmatpush.msra.mxu0 %v615
    %1257 = vmatmul.f32.gmra.mxu0 %v1216
    %v1258 = vpop.f32.mrf.mxu0
    %v1259 = vadd.f32 0.0, %v1258
    %1260 = vdwg.mxu0
    %1261 = vmatpush.msra.mxu0 %v661
    %1262 = vmatpush.msra.mxu0 %v658
    %1263 = vmatpush.msra.mxu0 %v655
    %1264 = vmatpush.msra.mxu0 %v652
    %1265 = vmatpush.msra.mxu0 %v649
    %1266 = vmatpush.msra.mxu0 %v646
    %1267 = vmatpush.msra.mxu0 %v643
    %1268 = vmatpush.msra.mxu0 %v640
    %1269 = vmatpush.msra.mxu0 %v637
    %1270 = vmatpush.msra.mxu0 %v634
    %1271 = vmatpush.msra.mxu0 %v631
    %1272 = vmatpush.msra.mxu0 %v628
    %1273 = vmatpush.msra.mxu0 %v625
    %1274 = vmatpush.msra.mxu0 %v622
    %1275 = vmatpush.msra.mxu0 %v619
    %1276 = vmatpush.msra.mxu0 %v616
    %1277 = vmatmul.f32.gmra.mxu0 %v1216
    %v1278 = vpop.f32.mrf.mxu0
    %v1279 = vadd.f32 0.0, %v1278
    %1280 = vdwg.mxu0
    %v1281 = vadd.f32 %v1218, %v1239
    %v1282 = vxor.u32 %v1281, 2147483648
    %v1283 = vmul.f32 %v1282, 1.442695
    %v1284 = vpow.pop %v1283
    %v1285 = vadd.f32 %v1284, 1.0
    %v1286 = vrcp.pop %v1285
    %v1287 = vmul.f32 %v1285, %v1286
    %v1288 = vsub.f32 1.0, %v1287
    %v1289 = vmul.f32 %v1286, %v1288
    %v1290 = vadd.f32 %v1286, %v1289
    %vm1291 = vweird.f32 %v1285
    %vm1292 = vweird.f32 %v1286
    %vm1293 = vmor %vm1291, %vm1292
    %v1294 = vsel %vm1293, %v1286, %v1290
    %v1295 = vand.u32 2147483647, %v1285
    %vm1296 = vcmp.eq.f32.partialorder %v1295, 8.507059e+37
    %v1297 = vand.u32 %v1285, 2147483648
    %v1298 = vor.u32 1.1754944e-38, %v1297
    %v1299 = vsel %vm1296, %v1298, %v1294
    %v1300 = vmul.f32 1.0, %v1299
    %v1301 = vadd.f32 %v1219, %v1259
    %v1302 = vxor.u32 %v1301, 2147483648
    %v1303 = vmul.f32 %v1302, 1.442695
    %v1304 = vpow.pop %v1303
    %v1305 = vadd.f32 %v1304, 1.0
    %v1306 = vrcp.pop %v1305
    %v1307 = vmul.f32 %v1305, %v1306
    %v1308 = vsub.f32 1.0, %v1307
    %v1309 = vmul.f32 %v1306, %v1308
    %v1310 = vadd.f32 %v1306, %v1309
    %vm1311 = vweird.f32 %v1305
    %vm1312 = vweird.f32 %v1306
    %vm1313 = vmor %vm1311, %vm1312
    %v1314 = vsel %vm1313, %v1306, %v1310
    %v1315 = vand.u32 2147483647, %v1305
    %vm1316 = vcmp.eq.f32.partialorder %v1315, 8.507059e+37
    %v1317 = vand.u32 %v1305, 2147483648
    %v1318 = vor.u32 1.1754944e-38, %v1317
    %v1319 = vsel %vm1316, %v1318, %v1314
    %v1320 = vmul.f32 1.0, %v1319
    %v1321 = vadd.f32 %v1279, %v140
    %v1322 = vmul.f32 %v1300, %v1321
    %v1323 = vadd.f32 %v1220, %v1322
    %v1324 = vtanh.pop %v1323
    %v1325 = vsub.f32 %v1216, %v1324
    %v1326 = vmul.f32 %v1320, %v1325
    %v1327 = vadd.f32 %v1324, %v1326
    %1328 = vst [vmem:[#allocation3 + $0x28] sm:$0xff] %v1327
    %v1329 = vld [vmem:[#allocation2 + $0x90] sm:$0xff]
    %v1330 = vld [vmem:[#allocation2 + $0x98] sm:$0xff]
    %v1331 = vld [vmem:[#allocation2 + $0xa0] sm:$0xff]
    %1332 = vmatpush.msra.mxu0 %v659
    %1333 = vmatpush.msra.mxu0 %v656
    %1334 = vmatpush.msra.mxu0 %v653
    %1335 = vmatpush.msra.mxu0 %v650
    %1336 = vmatpush.msra.mxu0 %v647
    %1337 = vmatpush.msra.mxu0 %v644
    %1338 = vmatpush.msra.mxu0 %v641
    %1339 = vmatpush.msra.mxu0 %v638
    %1340 = vmatpush.msra.mxu0 %v635
    %1341 = vmatpush.msra.mxu0 %v632
    %1342 = vmatpush.msra.mxu0 %v629
    %1343 = vmatpush.msra.mxu0 %v626
    %1344 = vmatpush.msra.mxu0 %v623
    %1345 = vmatpush.msra.mxu0 %v620
    %1346 = vmatpush.msra.mxu0 %v617
    %1347 = vmatpush.msra.mxu0 %v614
    %1348 = vmatmul.f32.gmra.mxu0 %v1327
    %v1349 = vpop.f32.mrf.mxu0
    %v1350 = vadd.f32 0.0, %v1349
    %1351 = vdwg.mxu0
    %1352 = vmatpush.msra.mxu0 %v660
    %1353 = vmatpush.msra.mxu0 %v657
    %1354 = vmatpush.msra.mxu0 %v654
    %1355 = vmatpush.msra.mxu0 %v651
    %1356 = vmatpush.msra.mxu0 %v648
    %1357 = vmatpush.msra.mxu0 %v645
    %1358 = vmatpush.msra.mxu0 %v642
    %1359 = vmatpush.msra.mxu0 %v639
    %1360 = vmatpush.msra.mxu0 %v636
    %1361 = vmatpush.msra.mxu0 %v633
    %1362 = vmatpush.msra.mxu0 %v630
    %1363 = vmatpush.msra.mxu0 %v627
    %1364 = vmatpush.msra.mxu0 %v624
    %1365 = vmatpush.msra.mxu0 %v621
    %1366 = vmatpush.msra.mxu0 %v618
    %1367 = vmatpush.msra.mxu0 %v615
    %1368 = vmatmul.f32.gmra.mxu0 %v1327
    %v1369 = vpop.f32.mrf.mxu0
    %v1370 = vadd.f32 0.0, %v1369
    %1371 = vdwg.mxu0
    %1372 = vmatpush.msra.mxu0 %v661
    %1373 = vmatpush.msra.mxu0 %v658
    %1374 = vmatpush.msra.mxu0 %v655
    %1375 = vmatpush.msra.mxu0 %v652
    %1376 = vmatpush.msra.mxu0 %v649
    %1377 = vmatpush.msra.mxu0 %v646
    %1378 = vmatpush.msra.mxu0 %v643
    %1379 = vmatpush.msra.mxu0 %v640
    %1380 = vmatpush.msra.mxu0 %v637
    %1381 = vmatpush.msra.mxu0 %v634
    %1382 = vmatpush.msra.mxu0 %v631
    %1383 = vmatpush.msra.mxu0 %v628
    %1384 = vmatpush.msra.mxu0 %v625
    %1385 = vmatpush.msra.mxu0 %v622
    %1386 = vmatpush.msra.mxu0 %v619
    %1387 = vmatpush.msra.mxu0 %v616
    %1388 = vmatmul.f32.gmra.mxu0 %v1327
    %v1389 = vpop.f32.mrf.mxu0
    %v1390 = vadd.f32 0.0, %v1389
    %1391 = vdwg.mxu0
    %v1392 = vadd.f32 %v1329, %v1350
    %v1393 = vxor.u32 %v1392, 2147483648
    %v1394 = vmul.f32 %v1393, 1.442695
    %v1395 = vpow.pop %v1394
    %v1396 = vadd.f32 %v1395, 1.0
    %v1397 = vrcp.pop %v1396
    %v1398 = vmul.f32 %v1396, %v1397
    %v1399 = vsub.f32 1.0, %v1398
    %v1400 = vmul.f32 %v1397, %v1399
    %v1401 = vadd.f32 %v1397, %v1400
    %vm1402 = vweird.f32 %v1396
    %vm1403 = vweird.f32 %v1397
    %vm1404 = vmor %vm1402, %vm1403
    %v1405 = vsel %vm1404, %v1397, %v1401
    %v1406 = vand.u32 2147483647, %v1396
    %vm1407 = vcmp.eq.f32.partialorder %v1406, 8.507059e+37
    %v1408 = vand.u32 %v1396, 2147483648
    %v1409 = vor.u32 1.1754944e-38, %v1408
    %v1410 = vsel %vm1407, %v1409, %v1405
    %v1411 = vmul.f32 1.0, %v1410
    %v1412 = vadd.f32 %v1330, %v1370
    %v1413 = vxor.u32 %v1412, 2147483648
    %v1414 = vmul.f32 %v1413, 1.442695
    %v1415 = vpow.pop %v1414
    %v1416 = vadd.f32 %v1415, 1.0
    %v1417 = vrcp.pop %v1416
    %v1418 = vmul.f32 %v1416, %v1417
    %v1419 = vsub.f32 1.0, %v1418
    %v1420 = vmul.f32 %v1417, %v1419
    %v1421 = vadd.f32 %v1417, %v1420
    %vm1422 = vweird.f32 %v1416
    %vm1423 = vweird.f32 %v1417
    %vm1424 = vmor %vm1422, %vm1423
    %v1425 = vsel %vm1424, %v1417, %v1421
    %v1426 = vand.u32 2147483647, %v1416
    %vm1427 = vcmp.eq.f32.partialorder %v1426, 8.507059e+37
    %v1428 = vand.u32 %v1416, 2147483648
    %v1429 = vor.u32 1.1754944e-38, %v1428
    %v1430 = vsel %vm1427, %v1429, %v1425
    %v1431 = vmul.f32 1.0, %v1430
    %v1432 = vadd.f32 %v1390, %v140
    %v1433 = vmul.f32 %v1411, %v1432
    %v1434 = vadd.f32 %v1331, %v1433
    %v1435 = vtanh.pop %v1434
    %v1436 = vsub.f32 %v1327, %v1435
    %v1437 = vmul.f32 %v1431, %v1436
    %v1438 = vadd.f32 %v1435, %v1437
    %1439 = vst [vmem:[#allocation3 + $0x30] sm:$0xff] %v1438
    %v1440 = vld [vmem:[#allocation2 + $0xa8] sm:$0xff]
    %v1441 = vld [vmem:[#allocation2 + $0xb0] sm:$0xff]
    %v1442 = vld [vmem:[#allocation2 + $0xb8] sm:$0xff]
    %1443 = vmatpush.msra.mxu0 %v659
    %1444 = vmatpush.msra.mxu0 %v656
    %1445 = vmatpush.msra.mxu0 %v653
    %1446 = vmatpush.msra.mxu0 %v650
    %1447 = vmatpush.msra.mxu0 %v647
    %1448 = vmatpush.msra.mxu0 %v644
    %1449 = vmatpush.msra.mxu0 %v641
    %1450 = vmatpush.msra.mxu0 %v638
    %1451 = vmatpush.msra.mxu0 %v635
    %1452 = vmatpush.msra.mxu0 %v632
    %1453 = vmatpush.msra.mxu0 %v629
    %1454 = vmatpush.msra.mxu0 %v626
    %1455 = vmatpush.msra.mxu0 %v623
    %1456 = vmatpush.msra.mxu0 %v620
    %1457 = vmatpush.msra.mxu0 %v617
    %1458 = vmatpush.msra.mxu0 %v614
    %1459 = vmatmul.f32.gmra.mxu0 %v1438
    %v1460 = vpop.f32.mrf.mxu0
    %v1461 = vadd.f32 0.0, %v1460
    %1462 = vdwg.mxu0
    %1463 = vmatpush.msra.mxu0 %v660
    %1464 = vmatpush.msra.mxu0 %v657
    %1465 = vmatpush.msra.mxu0 %v654
    %1466 = vmatpush.msra.mxu0 %v651
    %1467 = vmatpush.msra.mxu0 %v648
    %1468 = vmatpush.msra.mxu0 %v645
    %1469 = vmatpush.msra.mxu0 %v642
    %1470 = vmatpush.msra.mxu0 %v639
    %1471 = vmatpush.msra.mxu0 %v636
    %1472 = vmatpush.msra.mxu0 %v633
    %1473 = vmatpush.msra.mxu0 %v630
    %1474 = vmatpush.msra.mxu0 %v627
    %1475 = vmatpush.msra.mxu0 %v624
    %1476 = vmatpush.msra.mxu0 %v621
    %1477 = vmatpush.msra.mxu0 %v618
    %1478 = vmatpush.msra.mxu0 %v615
    %1479 = vmatmul.f32.gmra.mxu0 %v1438
    %v1480 = vpop.f32.mrf.mxu0
    %v1481 = vadd.f32 0.0, %v1480
    %1482 = vdwg.mxu0
    %1483 = vmatpush.msra.mxu0 %v661
    %1484 = vmatpush.msra.mxu0 %v658
    %1485 = vmatpush.msra.mxu0 %v655
    %1486 = vmatpush.msra.mxu0 %v652
    %1487 = vmatpush.msra.mxu0 %v649
    %1488 = vmatpush.msra.mxu0 %v646
    %1489 = vmatpush.msra.mxu0 %v643
    %1490 = vmatpush.msra.mxu0 %v640
    %1491 = vmatpush.msra.mxu0 %v637
    %1492 = vmatpush.msra.mxu0 %v634
    %1493 = vmatpush.msra.mxu0 %v631
    %1494 = vmatpush.msra.mxu0 %v628
    %1495 = vmatpush.msra.mxu0 %v625
    %1496 = vmatpush.msra.mxu0 %v622
    %1497 = vmatpush.msra.mxu0 %v619
    %1498 = vmatpush.msra.mxu0 %v616
    %1499 = vmatmul.f32.gmra.mxu0 %v1438
    %v1500 = vpop.f32.mrf.mxu0
    %v1501 = vadd.f32 0.0, %v1500
    %1502 = vdwg.mxu0
    %v1503 = vadd.f32 %v1440, %v1461
    %v1504 = vxor.u32 %v1503, 2147483648
    %v1505 = vmul.f32 %v1504, 1.442695
    %v1506 = vpow.pop %v1505
    %v1507 = vadd.f32 %v1506, 1.0
    %v1508 = vrcp.pop %v1507
    %v1509 = vmul.f32 %v1507, %v1508
    %v1510 = vsub.f32 1.0, %v1509
    %v1511 = vmul.f32 %v1508, %v1510
    %v1512 = vadd.f32 %v1508, %v1511
    %vm1513 = vweird.f32 %v1507
    %vm1514 = vweird.f32 %v1508
    %vm1515 = vmor %vm1513, %vm1514
    %v1516 = vsel %vm1515, %v1508, %v1512
    %v1517 = vand.u32 2147483647, %v1507
    %vm1518 = vcmp.eq.f32.partialorder %v1517, 8.507059e+37
    %v1519 = vand.u32 %v1507, 2147483648
    %v1520 = vor.u32 1.1754944e-38, %v1519
    %v1521 = vsel %vm1518, %v1520, %v1516
    %v1522 = vmul.f32 1.0, %v1521
    %v1523 = vadd.f32 %v1441, %v1481
    %v1524 = vxor.u32 %v1523, 2147483648
    %v1525 = vmul.f32 %v1524, 1.442695
    %v1526 = vpow.pop %v1525
    %v1527 = vadd.f32 %v1526, 1.0
    %v1528 = vrcp.pop %v1527
    %v1529 = vmul.f32 %v1527, %v1528
    %v1530 = vsub.f32 1.0, %v1529
    %v1531 = vmul.f32 %v1528, %v1530
    %v1532 = vadd.f32 %v1528, %v1531
    %vm1533 = vweird.f32 %v1527
    %vm1534 = vweird.f32 %v1528
    %vm1535 = vmor %vm1533, %vm1534
    %v1536 = vsel %vm1535, %v1528, %v1532
    %v1537 = vand.u32 2147483647, %v1527
    %vm1538 = vcmp.eq.f32.partialorder %v1537, 8.507059e+37
    %v1539 = vand.u32 %v1527, 2147483648
    %v1540 = vor.u32 1.1754944e-38, %v1539
    %v1541 = vsel %vm1538, %v1540, %v1536
    %v1542 = vmul.f32 1.0, %v1541
    %v1543 = vadd.f32 %v1501, %v140
    %v1544 = vmul.f32 %v1522, %v1543
    %v1545 = vadd.f32 %v1442, %v1544
    %v1546 = vtanh.pop %v1545
    %v1547 = vsub.f32 %v1438, %v1546
    %v1548 = vmul.f32 %v1542, %v1547
    %v1549 = vadd.f32 %v1546, %v1548
    %1550 = vst [vmem:[#allocation3 + $0x38] sm:$0xff] %v1549
    %1551 = vst [vmem:[#allocation17] sm:$0xff] %v1549
    %v1552 = vld [vmem:[#allocation3] sm:$0xff]
    %v1553 = vld [vmem:[#allocation3 + $0x8] sm:$0xff]
    %v1554 = vld [vmem:[#allocation3 + $0x10] sm:$0xff]
    %v1555 = vld [vmem:[#allocation3 + $0x18] sm:$0xff]
    %v1556 = vld [vmem:[#allocation3 + $0x20] sm:$0xff]
    %v1557 = vld [vmem:[#allocation3 + $0x28] sm:$0xff]
    %v1558 = vld [vmem:[#allocation3 + $0x30] sm:$0xff]
    %v1559 = vld [vmem:[#allocation3 + $0x38] sm:$0xff]
    %v1560 = vld [vmem:[#allocation13] sm:$0xff]
    %v1561 = vld [vmem:[#allocation13 + $0x8] sm:$0xff]
    %v1562 = vld [vmem:[#allocation13 + $0x10] sm:$0xff]
    %v1563 = vld [vmem:[#allocation13 + $0x18] sm:$0xff]
    %v1564 = vld [vmem:[#allocation13 + $0x20] sm:$0xff]
    %v1565 = vld [vmem:[#allocation13 + $0x28] sm:$0xff]
    %v1566 = vld [vmem:[#allocation13 + $0x30] sm:$0xff]
    %v1567 = vld [vmem:[#allocation13 + $0x38] sm:$0xff]
    %v1568 = vld [vmem:[#allocation13 + $0x40] sm:$0xff]
    %v1569 = vld [vmem:[#allocation13 + $0x48] sm:$0xff]
    %v1570 = vld [vmem:[#allocation13 + $0x50] sm:$0xff]
    %v1571 = vld [vmem:[#allocation13 + $0x58] sm:$0xff]
    %v1572 = vld [vmem:[#allocation13 + $0x60] sm:$0xff]
    %v1573 = vld [vmem:[#allocation13 + $0x68] sm:$0xff]
    %v1574 = vld [vmem:[#allocation13 + $0x70] sm:$0xff]
    %v1575 = vld [vmem:[#allocation13 + $0x78] sm:$0xff]
    %1576 = vmatpush.msra.mxu0 %v1575
    %1577 = vmatpush.msra.mxu0 %v1574
    %1578 = vmatpush.msra.mxu0 %v1573
    %1579 = vmatpush.msra.mxu0 %v1572
    %1580 = vmatpush.msra.mxu0 %v1571
    %1581 = vmatpush.msra.mxu0 %v1570
    %1582 = vmatpush.msra.mxu0 %v1569
    %1583 = vmatpush.msra.mxu0 %v1568
    %1584 = vmatpush.msra.mxu0 %v1567
    %1585 = vmatpush.msra.mxu0 %v1566
    %1586 = vmatpush.msra.mxu0 %v1565
    %1587 = vmatpush.msra.mxu0 %v1564
    %1588 = vmatpush.msra.mxu0 %v1563
    %1589 = vmatpush.msra.mxu0 %v1562
    %1590 = vmatpush.msra.mxu0 %v1561
    %1591 = vmatpush.msra.mxu0 %v1560
    %1592 = vmatmul.f32.gmra.mxu0 %v1552
    %v1593 = vpop.f32.mrf.mxu0
    %v1594 = vadd.f32 %v141, %v1593
    %1595 = vmatmul.f32.gmra.mxu0 %v1553
    %v1596 = vpop.f32.mrf.mxu0
    %v1597 = vadd.f32 %v141, %v1596
    %1598 = vmatmul.f32.gmra.mxu0 %v1554
    %v1599 = vpop.f32.mrf.mxu0
    %v1600 = vadd.f32 %v141, %v1599
    %1601 = vmatmul.f32.gmra.mxu0 %v1555
    %v1602 = vpop.f32.mrf.mxu0
    %v1603 = vadd.f32 %v141, %v1602
    %1604 = vmatmul.f32.gmra.mxu0 %v1556
    %v1605 = vpop.f32.mrf.mxu0
    %v1606 = vadd.f32 %v141, %v1605
    %1607 = vmatmul.f32.gmra.mxu0 %v1557
    %v1608 = vpop.f32.mrf.mxu0
    %v1609 = vadd.f32 %v141, %v1608
    %1610 = vmatmul.f32.gmra.mxu0 %v1558
    %v1611 = vpop.f32.mrf.mxu0
    %v1612 = vadd.f32 %v141, %v1611
    %1613 = vmatmul.f32.gmra.mxu0 %v1559
    %v1614 = vpop.f32.mrf.mxu0
    %v1615 = vadd.f32 %v141, %v1614
    %1616 = vdwg.mxu0
    %vm1617 = vcmp.lt.s32.totalorder %v210, 8
    %v1618 = vsel %vm1617, %v1594, 0.0
    %v1619 = vsel %vm1617, %v1597, 0.0
    %v1620 = vsel %vm1617, %v1600, 0.0
    %v1621 = vsel %vm1617, %v1603, 0.0
    %v1622 = vsel %vm1617, %v1606, 0.0
    %v1623 = vsel %vm1617, %v1609, 0.0
    %v1624 = vsel %vm1617, %v1612, 0.0
    %v1625 = vsel %vm1617, %v1615, 0.0
    %1626 = vadd.xlane.f32.xlu0 %v1618
    %v1627 = vpop.xlane.xlu0 %1626
    %1628 = vadd.xlane.f32.xlu0 %v1619
    %v1629 = vpop.xlane.xlu0 %1628
    %1630 = vadd.xlane.f32.xlu0 %v1620
    %v1631 = vpop.xlane.xlu0 %1630
    %1632 = vadd.xlane.f32.xlu0 %v1621
    %v1633 = vpop.xlane.xlu0 %1632
    %1634 = vadd.xlane.f32.xlu0 %v1622
    %v1635 = vpop.xlane.xlu0 %1634
    %1636 = vadd.xlane.f32.xlu0 %v1623
    %v1637 = vpop.xlane.xlu0 %1636
    %1638 = vadd.xlane.f32.xlu0 %v1624
    %v1639 = vpop.xlane.xlu0 %1638
    %1640 = vadd.xlane.f32.xlu0 %v1625
    %v1641 = vpop.xlane.xlu0 %1640
    %v1642 = vmul.f32 %v1627, 0.125
    %v1643 = vmul.f32 %v1629, 0.125
    %v1644 = vmul.f32 %v1631, 0.125
    %v1645 = vmul.f32 %v1633, 0.125
    %v1646 = vmul.f32 %v1635, 0.125
    %v1647 = vmul.f32 %v1637, 0.125
    %v1648 = vmul.f32 %v1639, 0.125
    %v1649 = vmul.f32 %v1641, 0.125
    %v1650 = vsub.f32 %v1594, %v1642
    %v1651 = vsub.f32 %v1597, %v1643
    %v1652 = vsub.f32 %v1600, %v1644
    %v1653 = vsub.f32 %v1603, %v1645
    %v1654 = vsub.f32 %v1606, %v1646
    %v1655 = vsub.f32 %v1609, %v1647
    %v1656 = vsub.f32 %v1612, %v1648
    %v1657 = vsub.f32 %v1615, %v1649
    %v1658 = vsel %vm1617, %v1650, 0.0
    %v1659 = vsel %vm1617, %v1651, 0.0
    %v1660 = vsel %vm1617, %v1652, 0.0
    %v1661 = vsel %vm1617, %v1653, 0.0
    %v1662 = vsel %vm1617, %v1654, 0.0
    %v1663 = vsel %vm1617, %v1655, 0.0
    %v1664 = vsel %vm1617, %v1656, 0.0
    %v1665 = vsel %vm1617, %v1657, 0.0
    %v1666 = vmul.f32 %v1658, %v1658
    %v1667 = vmul.f32 %v1659, %v1659
    %v1668 = vmul.f32 %v1660, %v1660
    %v1669 = vmul.f32 %v1661, %v1661
    %v1670 = vmul.f32 %v1662, %v1662
    %v1671 = vmul.f32 %v1663, %v1663
    %v1672 = vmul.f32 %v1664, %v1664
    %v1673 = vmul.f32 %v1665, %v1665
    %1674 = vadd.xlane.f32.xlu0 %v1666
    %v1675 = vpop.xlane.xlu0 %1674
    %1676 = vadd.xlane.f32.xlu0 %v1667
    %v1677 = vpop.xlane.xlu0 %1676
    %1678 = vadd.xlane.f32.xlu0 %v1668
    %v1679 = vpop.xlane.xlu0 %1678
    %1680 = vadd.xlane.f32.xlu0 %v1669
    %v1681 = vpop.xlane.xlu0 %1680
    %1682 = vadd.xlane.f32.xlu0 %v1670
    %v1683 = vpop.xlane.xlu0 %1682
    %1684 = vadd.xlane.f32.xlu0 %v1671
    %v1685 = vpop.xlane.xlu0 %1684
    %1686 = vadd.xlane.f32.xlu0 %v1672
    %v1687 = vpop.xlane.xlu0 %1686
    %1688 = vadd.xlane.f32.xlu0 %v1673
    %v1689 = vpop.xlane.xlu0 %1688
    %v1690 = vmul.f32 %v1675, 0.125
    %v1691 = vmul.f32 %v1677, 0.125
    %v1692 = vmul.f32 %v1679, 0.125
    %v1693 = vmul.f32 %v1681, 0.125
    %v1694 = vmul.f32 %v1683, 0.125
    %v1695 = vmul.f32 %v1685, 0.125
    %v1696 = vmul.f32 %v1687, 0.125
    %v1697 = vmul.f32 %v1689, 0.125
    %v1698 = vadd.f32 %v1690, 1e-05
    %v1699 = vadd.f32 %v1691, 1e-05
    %v1700 = vadd.f32 %v1692, 1e-05
    %v1701 = vadd.f32 %v1693, 1e-05
    %v1702 = vadd.f32 %v1694, 1e-05
    %v1703 = vadd.f32 %v1695, 1e-05
    %v1704 = vadd.f32 %v1696, 1e-05
    %v1705 = vadd.f32 %v1697, 1e-05
    %v1706 = vrsqrt.pop %v1698
    %v1707 = vmul.f32 %v1706, %v1698
    %v1708 = vmul.f32 %v1707, %v1706
    %v1709 = vmul.f32 0.5, %v1708
    %v1710 = vsub.f32 1.5, %v1709
    %v1711 = vmul.f32 %v1706, %v1710
    %vm1712 = vweird.f32 %v1698
    %vm1713 = vweird.f32 %v1706
    %vm1714 = vmor %vm1712, %vm1713
    %v1715 = vsel %vm1714, %v1706, %v1711
    %v1716 = vrsqrt.pop %v1699
    %v1717 = vmul.f32 %v1716, %v1699
    %v1718 = vmul.f32 %v1717, %v1716
    %v1719 = vmul.f32 0.5, %v1718
    %v1720 = vsub.f32 1.5, %v1719
    %v1721 = vmul.f32 %v1716, %v1720
    %vm1722 = vweird.f32 %v1699
    %vm1723 = vweird.f32 %v1716
    %vm1724 = vmor %vm1722, %vm1723
    %v1725 = vsel %vm1724, %v1716, %v1721
    %v1726 = vrsqrt.pop %v1700
    %v1727 = vmul.f32 %v1726, %v1700
    %v1728 = vmul.f32 %v1727, %v1726
    %v1729 = vmul.f32 0.5, %v1728
    %v1730 = vsub.f32 1.5, %v1729
    %v1731 = vmul.f32 %v1726, %v1730
    %vm1732 = vweird.f32 %v1700
    %vm1733 = vweird.f32 %v1726
    %vm1734 = vmor %vm1732, %vm1733
    %v1735 = vsel %vm1734, %v1726, %v1731
    %v1736 = vrsqrt.pop %v1701
    %v1737 = vmul.f32 %v1736, %v1701
    %v1738 = vmul.f32 %v1737, %v1736
    %v1739 = vmul.f32 0.5, %v1738
    %v1740 = vsub.f32 1.5, %v1739
    %v1741 = vmul.f32 %v1736, %v1740
    %vm1742 = vweird.f32 %v1701
    %vm1743 = vweird.f32 %v1736
    %vm1744 = vmor %vm1742, %vm1743
    %v1745 = vsel %vm1744, %v1736, %v1741
    %v1746 = vrsqrt.pop %v1702
    %v1747 = vmul.f32 %v1746, %v1702
    %v1748 = vmul.f32 %v1747, %v1746
    %v1749 = vmul.f32 0.5, %v1748
    %v1750 = vsub.f32 1.5, %v1749
    %v1751 = vmul.f32 %v1746, %v1750
    %vm1752 = vweird.f32 %v1702
    %vm1753 = vweird.f32 %v1746
    %vm1754 = vmor %vm1752, %vm1753
    %v1755 = vsel %vm1754, %v1746, %v1751
    %v1756 = vrsqrt.pop %v1703
    %v1757 = vmul.f32 %v1756, %v1703
    %v1758 = vmul.f32 %v1757, %v1756
    %v1759 = vmul.f32 0.5, %v1758
    %v1760 = vsub.f32 1.5, %v1759
    %v1761 = vmul.f32 %v1756, %v1760
    %vm1762 = vweird.f32 %v1703
    %vm1763 = vweird.f32 %v1756
    %vm1764 = vmor %vm1762, %vm1763
    %v1765 = vsel %vm1764, %v1756, %v1761
    %v1766 = vrsqrt.pop %v1704
    %v1767 = vmul.f32 %v1766, %v1704
    %v1768 = vmul.f32 %v1767, %v1766
    %v1769 = vmul.f32 0.5, %v1768
    %v1770 = vsub.f32 1.5, %v1769
    %v1771 = vmul.f32 %v1766, %v1770
    %vm1772 = vweird.f32 %v1704
    %vm1773 = vweird.f32 %v1766
    %vm1774 = vmor %vm1772, %vm1773
    %v1775 = vsel %vm1774, %v1766, %v1771
    %v1776 = vrsqrt.pop %v1705
    %v1777 = vmul.f32 %v1776, %v1705
    %v1778 = vmul.f32 %v1777, %v1776
    %v1779 = vmul.f32 0.5, %v1778
    %v1780 = vsub.f32 1.5, %v1779
    %v1781 = vmul.f32 %v1776, %v1780
    %vm1782 = vweird.f32 %v1705
    %vm1783 = vweird.f32 %v1776
    %vm1784 = vmor %vm1782, %vm1783
    %v1785 = vsel %vm1784, %v1776, %v1781
    %v1786 = vmul.f32 %v1658, %v1715
    %v1787 = vmul.f32 %v1659, %v1725
    %v1788 = vmul.f32 %v1660, %v1735
    %v1789 = vmul.f32 %v1661, %v1745
    %v1790 = vmul.f32 %v1662, %v1755
    %v1791 = vmul.f32 %v1663, %v1765
    %v1792 = vmul.f32 %v1664, %v1775
    %v1793 = vmul.f32 %v1665, %v1785
    %v1794 = vmul.f32 %v1786, %v142
    %v1795 = vmul.f32 %v1787, %v142
    %v1796 = vmul.f32 %v1788, %v142
    %v1797 = vmul.f32 %v1789, %v142
    %v1798 = vmul.f32 %v1790, %v142
    %v1799 = vmul.f32 %v1791, %v142
    %v1800 = vmul.f32 %v1792, %v142
    %v1801 = vmul.f32 %v1793, %v142
    %v1802 = vadd.f32 %v1794, %v143
    %v1803 = vadd.f32 %v1795, %v143
    %v1804 = vadd.f32 %v1796, %v143
    %v1805 = vadd.f32 %v1797, %v143
    %v1806 = vadd.f32 %v1798, %v143
    %v1807 = vadd.f32 %v1799, %v143
    %v1808 = vadd.f32 %v1800, %v143
    %v1809 = vadd.f32 %v1801, %v143
    %1810 = vst [vmem:[#allocation16] sm:$0xff] %v1802
    %1811 = vst [vmem:[#allocation16 + $0x8] sm:$0xff] %v1803
    %1812 = vst [vmem:[#allocation16 + $0x10] sm:$0xff] %v1804
    %1813 = vst [vmem:[#allocation16 + $0x18] sm:$0xff] %v1805
    %1814 = vst [vmem:[#allocation16 + $0x20] sm:$0xff] %v1806
    %1815 = vst [vmem:[#allocation16 + $0x28] sm:$0xff] %v1807
    %1816 = vst [vmem:[#allocation16 + $0x30] sm:$0xff] %v1808
    %1817 = vst [vmem:[#allocation16 + $0x38] sm:$0xff] %v1809
    // Predicated region
    $region58: #{tpu_custom_call.1} parent=1 // pred_check
      _
    $region59: #{tpu_custom_call.1} parent=1 // pred_check_branch
      %1819 = sbr.rel (0) target = $region61
    $region60: #{tpu_custom_call.1} parent=1 // pred_region
      %1821 = vsyncadd [#allocation6], 0
      %s1822 = sshll.u32 [#allocation16], 4
      %s1823 = int_to_ptr.vmem [resolvable:$true] %s1822
      %s1824 = sshll.u32 %s7, 4
      %s1825 = int_to_ptr.hbm [resolvable:$true] %s1824
      %1830 = dma.vmem_to_hbm [thread:$0]  %s1823, 1024, %s1825, [#allocation6], 128, 128, 8
    $region61: #{tpu_custom_call.1} parent=1 // pred_fallthru
      _
    // Predicated region
    $region62: #{tpu_custom_call.1} parent=1 // pred_check
      _
    $region63: #{tpu_custom_call.1} parent=1 // pred_check_branch
      %1832 = sbr.rel (0) target = $region65
    $region64: #{tpu_custom_call.1} parent=1 // pred_region
      %1834 = vsyncadd [#allocation18], 0
      %s1836 = sshll.u32 [#allocation17], 4
      %s1837 = int_to_ptr.vmem [resolvable:$true] %s1836
      %s1838 = sshll.u32 %s8, 4
      %s1839 = int_to_ptr.hbm [resolvable:$true] %s1838
      %1841 = dma.vmem_to_hbm [thread:$0]  %s1837, 128, %s1839, [#allocation18]
    $region65: #{tpu_custom_call.1} parent=1 // pred_fallthru
      _
    // Predicated region
    $region66: #{tpu_custom_call.1} parent=1 // pred_check
      _
    $region67: #{tpu_custom_call.1} parent=1 // pred_check_branch
      %1843 = sbr.rel (0) target = $region69
    $region68: #{tpu_custom_call.1} parent=1 // pred_region
      %1845 = dma.done [#allocation6], 1024
    $region69: #{tpu_custom_call.1} parent=1 // pred_fallthru
      _
    // Predicated region
    $region70: #{tpu_custom_call.1} parent=1 // pred_check
      _
    $region71: #{tpu_custom_call.1} parent=1 // pred_check_branch
      %1847 = sbr.rel (0) target = $region73
    $region72: #{tpu_custom_call.1} parent=1 // pred_region
      %1849 = dma.done [#allocation18], 128
    $region73: #{tpu_custom_call.1} parent=1 // pred_fallthru
      _
    %1850 = vsyncpa [#allocation5], 1
    %1851 = vsyncpa [#allocation8], 1
    %1852 = vsyncpa [#allocation11], 1
    %1853 = vsyncpa [#allocation14], 1
    %1854 = vsyncpa [#allocation6], 1
    %1855 = vsyncpa [#allocation18], 1

</llo_original>
